<compile_context>
chip_gen: v7x
topology: tpu7x:2x2x1
jax: 0.10.0
libtpu: 0.0.40
codegen_flags: <defaults>
</compile_context>

<pallas_src>
import functools

import jax
import jax.numpy as jnp
from jax import lax
from jax.experimental import pallas as pl
from jax.experimental.pallas import tpu as pltpu

KERNEL_SIZES = (3, 5, 7)


def _spp_kernel(*refs, steps, out_slots, pad):
    # refs = (x_ref, out_ref_0 .. out_ref_{n-1}, pad_ref)
    #   x_ref:    (1, H, W, Ct)            VMEM (C on the lane axis)
    #   out_refs: n_out refs (1, H, W, Ct) VMEM (slot 0 = identity branch)
    #   pad_ref:  (H+2P, W+2P, Ct)         VMEM scratch, P = max stage pad
    x_ref = refs[0]
    out_refs = refs[1:-1]
    pad_ref = refs[-1]

    _, H, W, Ct = x_ref.shape
    P = pad
    dtype = x_ref.dtype
    if jnp.issubdtype(dtype, jnp.floating):
        neg = float("-inf")
    else:
        neg = int(jnp.iinfo(dtype).min)

    x = x_ref[0]            # (H, W, Ct)
    out_refs[0][0] = x      # identity branch of the concat

    # Fill only the -inf border strips of the padded scratch, once per grid
    # step.  The interior is (re)written at the start of every cascade stage;
    # the border is never overwritten, so it stays -inf across stages.
    if P > 0:
        Wp = W + 2 * P
        pad_ref[0:P, :, :] = jnp.full((P, Wp, Ct), neg, dtype=dtype)
        pad_ref[P + H:P + H + P, :, :] = jnp.full((P, Wp, Ct), neg, dtype=dtype)
        pad_ref[P:P + H, 0:P, :] = jnp.full((H, P, Ct), neg, dtype=dtype)
        pad_ref[P:P + H, P + W:P + W + P, :] = jnp.full((H, P, Ct), neg,
                                                        dtype=dtype)

    cur = x
    for s, slot in zip(steps, out_slots):
        p = s // 2
        if p > 0:
            # Stage input -> scratch interior (border already -inf).
            pad_ref[P:P + H, P:P + W, :] = cur
            # Row pass: shifts along H (leading dim).  Keep the W-extended
            # columns so the column pass sees its own -inf padding.
            rowmax = pad_ref[P - p:P - p + H, P - p:P + W + p, :]
            for d in range(1, s):
                rowmax = jnp.maximum(
                    rowmax,
                    pad_ref[P - p + d:P - p + d + H, P - p:P + W + p, :])
            # Column pass: small static sublane shifts along W.
            cur = rowmax[:, 0:W, :]
            for d in range(1, s):
                cur = jnp.maximum(cur, rowmax[:, d:d + W, :])
        out_refs[slot][0] = cur


def _pick_c_tile(C, H, W, n_out, pad, itemsize,
                 vmem_budget_bytes=16 * 1024 * 1024):
    """Largest channel tile that is legal as a lane-dim block (== C, or a
    multiple of 128 dividing C) and keeps double-buffered blocks + scratch
    under a conservative VMEM budget (v7x only has 64 MiB physical VMEM)."""
    def vmem_bytes(ct):
        blocks = 2 * H * W * ct + 2 * n_out * H * W * ct   # double-buffered
        scratch = (H + 2 * pad) * (W + 2 * pad) * ct
        return (blocks + scratch) * itemsize

    if vmem_bytes(C) <= vmem_budget_bytes or C % 128 != 0:
        return C
    for ct in range(C - 128, 0, -128):
        if C % ct == 0 and vmem_bytes(ct) <= vmem_budget_bytes:
            return ct
    return 128


def spp(x, kernel_sizes=KERNEL_SIZES):
    B, C, H, W = x.shape
    for k in kernel_sizes:
        if k % 2 != 1:
            raise ValueError("SPP stride-1 'same' pooling requires odd kernel "
                             "sizes (as does the PyTorch module's concat).")

    # Cascade schedule: compute pools smallest-to-largest; pooling the previous
    # stage's result with a window of (k_i - k_{i-1} + 1) is exactly equivalent
    # to pooling x with k_i (stride-1, same padding, -inf boundary).
    order = sorted(range(len(kernel_sizes)), key=lambda i: kernel_sizes[i])
    steps, prev = [], 1
    for i in order:
        steps.append(kernel_sizes[i] - prev + 1)
        prev = kernel_sizes[i]
    out_slots = [1 + i for i in order]                 # slot 0 = identity
    pad = max((s // 2 for s in steps), default=0)

    n_out = 1 + len(kernel_sizes)
    c_tile = _pick_c_tile(C, H, W, n_out, pad, x.dtype.itemsize)

    x_nhwc = jnp.transpose(x, (0, 2, 3, 1))            # channels -> lane axis

    kernel = functools.partial(_spp_kernel, steps=tuple(steps),
                               out_slots=tuple(out_slots), pad=pad)
    block = (1, H, W, c_tile)
    idx_map = lambda b, c: (b, 0, 0, c)

    outs = pl.pallas_call(
        kernel,
        out_shape=tuple(jax.ShapeDtypeStruct((B, H, W, C), x.dtype)
                        for _ in range(n_out)),
        grid=(B, C // c_tile),
        in_specs=[pl.BlockSpec(block, idx_map)],
        out_specs=tuple(pl.BlockSpec(block, idx_map) for _ in range(n_out)),
        scratch_shapes=[
            pltpu.VMEM((H + 2 * pad, W + 2 * pad, c_tile), x.dtype)],
        compiler_params=pltpu.CompilerParams(
            dimension_semantics=("parallel", "parallel")),
    )(x_nhwc)

    # torch.cat([x, x1, x2, x3], dim=1) in NCHW.
    return jnp.concatenate([jnp.transpose(o, (0, 3, 1, 2)) for o in outs],
                           axis=1)


def spp_reference(x, kernel_sizes=KERNEL_SIZES):
    """Pure-JAX reference via lax.reduce_window (== PyTorch MaxPool2d)."""
    outs = [x]
    for k in kernel_sizes:
        p = k // 2
        outs.append(lax.reduce_window(
            x, -jnp.inf, lax.max,
            window_dimensions=(1, 1, k, k),
            window_strides=(1, 1, 1, 1),
            padding=[(0, 0), (0, 0), (p, p), (p, p)]))
    return jnp.concatenate(outs, axis=1)


if __name__ == "__main__":
    key = jax.random.PRNGKey(0)
    B, C, H, W = 2, 4, 16, 16
    x = jax.random.normal(key, (B, C, H, W), dtype=jnp.float32)

    out = spp(x)
    jax.block_until_ready(out)

    ref = spp_reference(x)
    assert out.shape == (B, 4 * C, H, W), out.shape
    assert jnp.allclose(out, ref, atol=1e-6, rtol=1e-6), "mismatch (3,5,7)"

    # Exercise the general cascade path (unsorted order, larger kernels).
    for ks in ((7, 3, 5), (5, 9, 13)):
        out2 = spp(x, ks)
        jax.block_until_ready(out2)
        assert jnp.allclose(out2, spp_reference(x, ks),
                            atol=1e-6, rtol=1e-6), f"mismatch {ks}"

    print("KERNEL_OK")
</pallas_src>

<mosaic_0001>
module attributes {stable_mosaic.version = 11 : i64} {
  func.func @_spp_kernel(%arg0: i32, %arg1: i32, %arg2: memref<1x16x16x4xf32, #tpu.memory_space<vmem>>, %arg3: memref<1x16x16x4xf32, #tpu.memory_space<vmem>>, %arg4: memref<1x16x16x4xf32, #tpu.memory_space<vmem>>, %arg5: memref<1x16x16x4xf32, #tpu.memory_space<vmem>>, %arg6: memref<1x16x16x4xf32, #tpu.memory_space<vmem>>, %arg7: memref<18x18x4xf32, #tpu.memory_space<vmem>>) attributes {dimension_semantics = [#tpu.dimension_semantics<parallel>, #tpu.dimension_semantics<parallel>], iteration_bounds = array<i64: 2, 1>, scalar_prefetch = 0 : i64, scratch_operands = 1 : i64, tpu.core_type = #tpu.core_type<tc>, window_params = [{transform_indices = @transform_0, window_bounds = array<i64: 1, 16, 16, 4>}, {transform_indices = @transform_1, window_bounds = array<i64: 1, 16, 16, 4>}, {transform_indices = @transform_2, window_bounds = array<i64: 1, 16, 16, 4>}, {transform_indices = @transform_3, window_bounds = array<i64: 1, 16, 16, 4>}, {transform_indices = @transform_4, window_bounds = array<i64: 1, 16, 16, 4>}]} {
    %c0 = arith.constant 0 : index
    %c0_0 = arith.constant 0 : index
    %c0_1 = arith.constant 0 : index
    %c0_2 = arith.constant 0 : index
    %0 = vector.load %arg2[%c0, %c0_0, %c0_1, %c0_2] : memref<1x16x16x4xf32, #tpu.memory_space<vmem>>, vector<1x16x16x4xf32>
    %1 = vector.shape_cast %0 : vector<1x16x16x4xf32> to vector<16x16x4xf32>
    %c0_3 = arith.constant 0 : index
    %c0_4 = arith.constant 0 : index
    %c0_5 = arith.constant 0 : index
    %c0_6 = arith.constant 0 : index
    %2 = vector.load %arg3[%c0_3, %c0_4, %c0_5, %c0_6] : memref<1x16x16x4xf32, #tpu.memory_space<vmem>>, vector<1x16x16x4xf32>
    %3 = vector.shape_cast %2 : vector<1x16x16x4xf32> to vector<16x16x4xf32>
    %4 = vector.shape_cast %1 : vector<16x16x4xf32> to vector<1x16x16x4xf32>
    tpu.vector_store %arg3[%c0_3, %c0_4, %c0_5, %c0_6], %4 {strides = array<i32>} : memref<1x16x16x4xf32, #tpu.memory_space<vmem>>, vector<1x16x16x4xf32>,
    %cst = arith.constant 0xFF800000 : f32
    %5 = vector.broadcast %cst : f32 to vector<1x18x4xf32>
    %c0_7 = arith.constant 0 : index
    %c0_8 = arith.constant 0 : index
    %c0_9 = arith.constant 0 : index
    %6 = vector.load %arg7[%c0_7, %c0_8, %c0_9] : memref<18x18x4xf32, #tpu.memory_space<vmem>>, vector<1x18x4xf32>
    tpu.vector_store %arg7[%c0_7, %c0_8, %c0_9], %5 {strides = array<i32>} : memref<18x18x4xf32, #tpu.memory_space<vmem>>, vector<1x18x4xf32>,
    %cst_10 = arith.constant 0xFF800000 : f32
    %7 = vector.broadcast %cst_10 : f32 to vector<1x18x4xf32>
    %c17 = arith.constant 17 : index
    %c0_11 = arith.constant 0 : index
    %c0_12 = arith.constant 0 : index
    %8 = vector.load %arg7[%c17, %c0_11, %c0_12] : memref<18x18x4xf32, #tpu.memory_space<vmem>>, vector<1x18x4xf32>
    tpu.vector_store %arg7[%c17, %c0_11, %c0_12], %7 {strides = array<i32>} : memref<18x18x4xf32, #tpu.memory_space<vmem>>, vector<1x18x4xf32>,
    %cst_13 = arith.constant 0xFF800000 : f32
    %9 = vector.broadcast %cst_13 : f32 to vector<16x1x4xf32>
    %c1 = arith.constant 1 : index
    %c0_14 = arith.constant 0 : index
    %c0_15 = arith.constant 0 : index
    %10 = vector.load %arg7[%c1, %c0_14, %c0_15] : memref<18x18x4xf32, #tpu.memory_space<vmem>>, vector<16x1x4xf32>
    tpu.vector_store %arg7[%c1, %c0_14, %c0_15], %9 {strides = array<i32>} : memref<18x18x4xf32, #tpu.memory_space<vmem>>, vector<16x1x4xf32>,
    %cst_16 = arith.constant 0xFF800000 : f32
    %11 = vector.broadcast %cst_16 : f32 to vector<16x1x4xf32>
    %c1_17 = arith.constant 1 : index
    %c17_18 = arith.constant 17 : index
    %c0_19 = arith.constant 0 : index
    %12 = vector.load %arg7[%c1_17, %c17_18, %c0_19] : memref<18x18x4xf32, #tpu.memory_space<vmem>>, vector<16x1x4xf32>
    tpu.vector_store %arg7[%c1_17, %c17_18, %c0_19], %11 {strides = array<i32>} : memref<18x18x4xf32, #tpu.memory_space<vmem>>, vector<16x1x4xf32>,
    %c1_20 = arith.constant 1 : index
    %c1_21 = arith.constant 1 : index
    %c0_22 = arith.constant 0 : index
    %13 = vector.load %arg7[%c1_20, %c1_21, %c0_22] : memref<18x18x4xf32, #tpu.memory_space<vmem>>, vector<16x16x4xf32>
    tpu.vector_store %arg7[%c1_20, %c1_21, %c0_22], %1 {strides = array<i32>} : memref<18x18x4xf32, #tpu.memory_space<vmem>>, vector<16x16x4xf32>,
    %c0_23 = arith.constant 0 : index
    %c0_24 = arith.constant 0 : index
    %c0_25 = arith.constant 0 : index
    %14 = vector.load %arg7[%c0_23, %c0_24, %c0_25] : memref<18x18x4xf32, #tpu.memory_space<vmem>>, vector<16x18x4xf32>
    %c1_26 = arith.constant 1 : index
    %c0_27 = arith.constant 0 : index
    %c0_28 = arith.constant 0 : index
    %15 = vector.load %arg7[%c1_26, %c0_27, %c0_28] : memref<18x18x4xf32, #tpu.memory_space<vmem>>, vector<16x18x4xf32>
    %16 = arith.maximumf %14, %15 : vector<16x18x4xf32>
    %c2 = arith.constant 2 : index
    %c0_29 = arith.constant 0 : index
    %c0_30 = arith.constant 0 : index
    %17 = vector.load %arg7[%c2, %c0_29, %c0_30] : memref<18x18x4xf32, #tpu.memory_space<vmem>>, vector<16x18x4xf32>
    %18 = arith.maximumf %16, %17 : vector<16x18x4xf32>
    %19 = vector.extract_strided_slice %18 {offsets = [0, 0, 0], sizes = [16, 16, 4], strides = [1, 1, 1]} : vector<16x18x4xf32> to vector<16x16x4xf32>
    %20 = vector.extract_strided_slice %18 {offsets = [0, 1, 0], sizes = [16, 16, 4], strides = [1, 1, 1]} : vector<16x18x4xf32> to vector<16x16x4xf32>
    %21 = arith.maximumf %19, %20 : vector<16x16x4xf32>
    %22 = vector.extract_strided_slice %18 {offsets = [0, 2, 0], sizes = [16, 16, 4], strides = [1, 1, 1]} : vector<16x18x4xf32> to vector<16x16x4xf32>
    %23 = arith.maximumf %21, %22 : vector<16x16x4xf32>
    %c0_31 = arith.constant 0 : index
    %c0_32 = arith.constant 0 : index
    %c0_33 = arith.constant 0 : index
    %c0_34 = arith.constant 0 : index
    %24 = vector.load %arg4[%c0_31, %c0_32, %c0_33, %c0_34] : memref<1x16x16x4xf32, #tpu.memory_space<vmem>>, vector<1x16x16x4xf32>
    %25 = vector.shape_cast %24 : vector<1x16x16x4xf32> to vector<16x16x4xf32>
    %26 = vector.shape_cast %23 : vector<16x16x4xf32> to vector<1x16x16x4xf32>
    tpu.vector_store %arg4[%c0_31, %c0_32, %c0_33, %c0_34], %26 {strides = array<i32>} : memref<1x16x16x4xf32, #tpu.memory_space<vmem>>, vector<1x16x16x4xf32>,
    %c1_35 = arith.constant 1 : index
    %c1_36 = arith.constant 1 : index
    %c0_37 = arith.constant 0 : index
    %27 = vector.load %arg7[%c1_35, %c1_36, %c0_37] : memref<18x18x4xf32, #tpu.memory_space<vmem>>, vector<16x16x4xf32>
    tpu.vector_store %arg7[%c1_35, %c1_36, %c0_37], %23 {strides = array<i32>} : memref<18x18x4xf32, #tpu.memory_space<vmem>>, vector<16x16x4xf32>,
    %c0_38 = arith.constant 0 : index
    %c0_39 = arith.constant 0 : index
    %c0_40 = arith.constant 0 : index
    %28 = vector.load %arg7[%c0_38, %c0_39, %c0_40] : memref<18x18x4xf32, #tpu.memory_space<vmem>>, vector<16x18x4xf32>
    %c1_41 = arith.constant 1 : index
    %c0_42 = arith.constant 0 : index
    %c0_43 = arith.constant 0 : index
    %29 = vector.load %arg7[%c1_41, %c0_42, %c0_43] : memref<18x18x4xf32, #tpu.memory_space<vmem>>, vector<16x18x4xf32>
    %30 = arith.maximumf %28, %29 : vector<16x18x4xf32>
    %c2_44 = arith.constant 2 : index
    %c0_45 = arith.constant 0 : index
    %c0_46 = arith.constant 0 : index
    %31 = vector.load %arg7[%c2_44, %c0_45, %c0_46] : memref<18x18x4xf32, #tpu.memory_space<vmem>>, vector<16x18x4xf32>
    %32 = arith.maximumf %30, %31 : vector<16x18x4xf32>
    %33 = vector.extract_strided_slice %32 {offsets = [0, 0, 0], sizes = [16, 16, 4], strides = [1, 1, 1]} : vector<16x18x4xf32> to vector<16x16x4xf32>
    %34 = vector.extract_strided_slice %32 {offsets = [0, 1, 0], sizes = [16, 16, 4], strides = [1, 1, 1]} : vector<16x18x4xf32> to vector<16x16x4xf32>
    %35 = arith.maximumf %33, %34 : vector<16x16x4xf32>
    %36 = vector.extract_strided_slice %32 {offsets = [0, 2, 0], sizes = [16, 16, 4], strides = [1, 1, 1]} : vector<16x18x4xf32> to vector<16x16x4xf32>
    %37 = arith.maximumf %35, %36 : vector<16x16x4xf32>
    %c0_47 = arith.constant 0 : index
    %c0_48 = arith.constant 0 : index
    %c0_49 = arith.constant 0 : index
    %c0_50 = arith.constant 0 : index
    %38 = vector.load %arg5[%c0_47, %c0_48, %c0_49, %c0_50] : memref<1x16x16x4xf32, #tpu.memory_space<vmem>>, vector<1x16x16x4xf32>
    %39 = vector.shape_cast %38 : vector<1x16x16x4xf32> to vector<16x16x4xf32>
    %40 = vector.shape_cast %37 : vector<16x16x4xf32> to vector<1x16x16x4xf32>
    tpu.vector_store %arg5[%c0_47, %c0_48, %c0_49, %c0_50], %40 {strides = array<i32>} : memref<1x16x16x4xf32, #tpu.memory_space<vmem>>, vector<1x16x16x4xf32>,
    %c1_51 = arith.constant 1 : index
    %c1_52 = arith.constant 1 : index
    %c0_53 = arith.constant 0 : index
    %41 = vector.load %arg7[%c1_51, %c1_52, %c0_53] : memref<18x18x4xf32, #tpu.memory_space<vmem>>, vector<16x16x4xf32>
    tpu.vector_store %arg7[%c1_51, %c1_52, %c0_53], %37 {strides = array<i32>} : memref<18x18x4xf32, #tpu.memory_space<vmem>>, vector<16x16x4xf32>,
    %c0_54 = arith.constant 0 : index
    %c0_55 = arith.constant 0 : index
    %c0_56 = arith.constant 0 : index
    %42 = vector.load %arg7[%c0_54, %c0_55, %c0_56] : memref<18x18x4xf32, #tpu.memory_space<vmem>>, vector<16x18x4xf32>
    %c1_57 = arith.constant 1 : index
    %c0_58 = arith.constant 0 : index
    %c0_59 = arith.constant 0 : index
    %43 = vector.load %arg7[%c1_57, %c0_58, %c0_59] : memref<18x18x4xf32, #tpu.memory_space<vmem>>, vector<16x18x4xf32>
    %44 = arith.maximumf %42, %43 : vector<16x18x4xf32>
    %c2_60 = arith.constant 2 : index
    %c0_61 = arith.constant 0 : index
    %c0_62 = arith.constant 0 : index
    %45 = vector.load %arg7[%c2_60, %c0_61, %c0_62] : memref<18x18x4xf32, #tpu.memory_space<vmem>>, vector<16x18x4xf32>
    %46 = arith.maximumf %44, %45 : vector<16x18x4xf32>
    %47 = vector.extract_strided_slice %46 {offsets = [0, 0, 0], sizes = [16, 16, 4], strides = [1, 1, 1]} : vector<16x18x4xf32> to vector<16x16x4xf32>
    %48 = vector.extract_strided_slice %46 {offsets = [0, 1, 0], sizes = [16, 16, 4], strides = [1, 1, 1]} : vector<16x18x4xf32> to vector<16x16x4xf32>
    %49 = arith.maximumf %47, %48 : vector<16x16x4xf32>
    %50 = vector.extract_strided_slice %46 {offsets = [0, 2, 0], sizes = [16, 16, 4], strides = [1, 1, 1]} : vector<16x18x4xf32> to vector<16x16x4xf32>
    %51 = arith.maximumf %49, %50 : vector<16x16x4xf32>
    %c0_63 = arith.constant 0 : index
    %c0_64 = arith.constant 0 : index
    %c0_65 = arith.constant 0 : index
    %c0_66 = arith.constant 0 : index
    %52 = vector.load %arg6[%c0_63, %c0_64, %c0_65, %c0_66] : memref<1x16x16x4xf32, #tpu.memory_space<vmem>>, vector<1x16x16x4xf32>
    %53 = vector.shape_cast %52 : vector<1x16x16x4xf32> to vector<16x16x4xf32>
    %54 = vector.shape_cast %51 : vector<16x16x4xf32> to vector<1x16x16x4xf32>
    tpu.vector_store %arg6[%c0_63, %c0_64, %c0_65, %c0_66], %54 {strides = array<i32>} : memref<1x16x16x4xf32, #tpu.memory_space<vmem>>, vector<1x16x16x4xf32>,
    return
  }
  func.func @transform_0(%arg0: i32, %arg1: i32) -> (i32, i32, i32, i32) {
    %c0_i32 = arith.constant 0 : i32
    %c0_i32_0 = arith.constant 0 : i32
    %c0_i32_1 = arith.constant 0 : i32
    return %arg0, %c0_i32, %c0_i32_0, %arg1 : i32, i32, i32, i32
  }
  func.func @transform_1(%arg0: i32, %arg1: i32) -> (i32, i32, i32, i32) {
    %c0_i32 = arith.constant 0 : i32
    %c0_i32_0 = arith.constant 0 : i32
    %c0_i32_1 = arith.constant 0 : i32
    return %arg0, %c0_i32, %c0_i32_0, %arg1 : i32, i32, i32, i32
  }
  func.func @transform_2(%arg0: i32, %arg1: i32) -> (i32, i32, i32, i32) {
    %c0_i32 = arith.constant 0 : i32
    %c0_i32_0 = arith.constant 0 : i32
    %c0_i32_1 = arith.constant 0 : i32
    return %arg0, %c0_i32, %c0_i32_0, %arg1 : i32, i32, i32, i32
  }
  func.func @transform_3(%arg0: i32, %arg1: i32) -> (i32, i32, i32, i32) {
    %c0_i32 = arith.constant 0 : i32
    %c0_i32_0 = arith.constant 0 : i32
    %c0_i32_1 = arith.constant 0 : i32
    return %arg0, %c0_i32, %c0_i32_0, %arg1 : i32, i32, i32, i32
  }
  func.func @transform_4(%arg0: i32, %arg1: i32) -> (i32, i32, i32, i32) {
    %c0_i32 = arith.constant 0 : i32
    %c0_i32_0 = arith.constant 0 : i32
    %c0_i32_1 = arith.constant 0 : i32
    return %arg0, %c0_i32, %c0_i32_0, %arg1 : i32, i32, i32, i32
  }
}

</mosaic_0001>

<llo_original>
// kernel: tpu_custom_call.1
$region0: #{tpu_custom_call.1}
  #allocation0 [shape = 'u32[]', space=smem, size = 0x4, offset = 0x4, fixed_abs, tag = 'smem constant byte address 0x4 - core index']
  #allocation1 [shape = 'u32[144,128]{1,0:T(1,128)}', space=vmem, size = 0x12000, scoped, tag = 'internal scratch']
  #allocation2 [shape = 'f32[18,18,4]{2,1,0:T(8,128)}', space=vmem, size = 0x36000, scoped, tag = 'scratch operand']
  %s0 = inlined_call_operand.vmem [shape: f32[2,16,16,4], index: 0, kind: input, shape index: {}]
  %s1 = inlined_call_operand.vmem [shape: f32[2,16,16,4], index: 1, kind: output, shape index: {0}]
  %s2 = inlined_call_operand.vmem [shape: f32[2,16,16,4], index: 2, kind: output, shape index: {1}]
  %s3 = inlined_call_operand.vmem [shape: f32[2,16,16,4], index: 3, kind: output, shape index: {2}]
  %s4 = inlined_call_operand.vmem [shape: f32[2,16,16,4], index: 4, kind: output, shape index: {3}]
  %5 = xla_tuple %s1, %s2, %s3, %s4
  %s6 = sld [smem:[#allocation0]]
  $region61: #{tpu_custom_call.1} parent=0
    _
  %s8 = ssub.s32 1, %s6
  %s9 = scalar_select 0, %s8, %s6
  loop: start=0, step=1, limit=4
  $region2: #{tpu_custom_call.1} parent=0 // loop_pre_header
    _
  $region3: #{tpu_custom_call.1} parent=0 // loop_header
    %s11 = sphi 0, %s15
    %p12 = scmp.ge.s32.totalorder %s11, 4
    %s18 = sphi 0, %s30
    %s19 = sphi 0, %s26
    %s20 = sphi 0, %s18
    %s21 = sphi 0, %s19
    %s22 = sphi 0, %s20
    %s23 = sphi 0, %s21
    %s35 = sphi 0, %s37
    %s38 = sphi 0, %s35
    %s39 = sphi 0, %s38
    %s55 = sphi 0, %s39
    %s63 = sphi 0, %s65
    %s66 = sphi 0, %s63
    %s67 = sphi 0, %s66
    %s83 = sphi 0, %s67
    %s91 = sphi 0, %s93
    %s94 = sphi 0, %s91
    %s95 = sphi 0, %s94
    %s111 = sphi 0, %s95
    %s119 = sphi 0, %s121
    %s122 = sphi 0, %s119
    %s123 = sphi 0, %s122
    %s139 = sphi 0, %s123
    %s147 = sphi 0, %s149
    %s150 = sphi 0, %s147
    %s151 = sphi 0, %s150
    %s167 = sphi 0, %s151
  $region4: #{tpu_custom_call.1} parent=0 // loop_header_branch
    %14 = sbr.rel (%p12) target = $region8
  $region5: #{tpu_custom_call.1} parent=0 // loop_body
    %s16 = ssub.s32 %s11, 1
    %s17 = ssub.s32 %s11, 2
    %s24 = sadd.s32 1, %s19
    %p25 = scmp.ge.s32.totalorder %s24, 1
    %s26 = scalar_select %p25, 0, %s24
    %s27 = sadd.s32 1, %s18
    %s28 = scalar_select %p25, %s27, %s18
    %p29 = scmp.ge.s32.totalorder %s28, 2
    %s30 = scalar_select %p29, 0, %s28
    %s31 = ssub.s32 %s18, %s30
    %s32 = ssub.s32 %s19, %s26
    %s33 = sor.u32 %s31, %s32
    %p34 = scmp.eq.s32.totalorder %s33, 0
    %s36 = sadd.s32 %s35, 1
    %s37 = scalar_select %p34, %s35, %s36
    %p40 = pneg %p34
    %p41 = scmp.eq.s32.totalorder %s11, 1
    %p42 = por %p40, %p41
    %p43 = scmp.ne.s32.totalorder %s35, %s38
    %p44 = scmp.eq.s32.totalorder %s11, 0
    %p45 = por %p43, %p44
    %p46 = scmp.ne.s32.totalorder %s35, %s38
    %p47 = scmp.eq.s32.totalorder %s16, 1
    %p48 = por %p46, %p47
    %p49 = scmp.ne.s32.totalorder %s38, %s39
    %p50 = scmp.eq.s32.totalorder %s16, 0
    %p51 = por %p49, %p50
    %p52 = scmp.ne.s32.totalorder %s38, %s39
    %p53 = scmp.eq.s32.totalorder %s17, 1
    %p54 = por %p52, %p53
    %p56 = scmp.ne.s32.totalorder %s39, %s55
    %p57 = scmp.eq.s32.totalorder %s17, 0
    %p58 = por %p56, %p57
    %s59 = ssub.s32 %s18, %s30
    %s60 = ssub.s32 %s19, %s26
    %s61 = sor.u32 %s59, %s60
    %p62 = scmp.eq.s32.totalorder %s61, 0
    %s64 = sadd.s32 %s63, 1
    %s65 = scalar_select %p62, %s63, %s64
    %p68 = pneg %p62
    %p69 = scmp.eq.s32.totalorder %s11, 1
    %p70 = por %p68, %p69
    %p71 = scmp.ne.s32.totalorder %s63, %s66
    %p72 = scmp.eq.s32.totalorder %s11, 0
    %p73 = por %p71, %p72
    %p74 = scmp.ne.s32.totalorder %s63, %s66
    %p75 = scmp.eq.s32.totalorder %s16, 1
    %p76 = por %p74, %p75
    %p77 = scmp.ne.s32.totalorder %s66, %s67
    %p78 = scmp.eq.s32.totalorder %s16, 0
    %p79 = por %p77, %p78
    %p80 = scmp.ne.s32.totalorder %s66, %s67
    %p81 = scmp.eq.s32.totalorder %s17, 1
    %p82 = por %p80, %p81
    %p84 = scmp.ne.s32.totalorder %s67, %s83
    %p85 = scmp.eq.s32.totalorder %s17, 0
    %p86 = por %p84, %p85
    %s87 = ssub.s32 %s18, %s30
    %s88 = ssub.s32 %s19, %s26
    %s89 = sor.u32 %s87, %s88
    %p90 = scmp.eq.s32.totalorder %s89, 0
    %s92 = sadd.s32 %s91, 1
    %s93 = scalar_select %p90, %s91, %s92
    %p96 = pneg %p90
    %p97 = scmp.eq.s32.totalorder %s11, 1
    %p98 = por %p96, %p97
    %p99 = scmp.ne.s32.totalorder %s91, %s94
    %p100 = scmp.eq.s32.totalorder %s11, 0
    %p101 = por %p99, %p100
    %p102 = scmp.ne.s32.totalorder %s91, %s94
    %p103 = scmp.eq.s32.totalorder %s16, 1
    %p104 = por %p102, %p103
    %p105 = scmp.ne.s32.totalorder %s94, %s95
    %p106 = scmp.eq.s32.totalorder %s16, 0
    %p107 = por %p105, %p106
    %p108 = scmp.ne.s32.totalorder %s94, %s95
    %p109 = scmp.eq.s32.totalorder %s17, 1
    %p110 = por %p108, %p109
    %p112 = scmp.ne.s32.totalorder %s95, %s111
    %p113 = scmp.eq.s32.totalorder %s17, 0
    %p114 = por %p112, %p113
    %s115 = ssub.s32 %s18, %s30
    %s116 = ssub.s32 %s19, %s26
    %s117 = sor.u32 %s115, %s116
    %p118 = scmp.eq.s32.totalorder %s117, 0
    %s120 = sadd.s32 %s119, 1
    %s121 = scalar_select %p118, %s119, %s120
    %p124 = pneg %p118
    %p125 = scmp.eq.s32.totalorder %s11, 1
    %p126 = por %p124, %p125
    %p127 = scmp.ne.s32.totalorder %s119, %s122
    %p128 = scmp.eq.s32.totalorder %s11, 0
    %p129 = por %p127, %p128
    %p130 = scmp.ne.s32.totalorder %s119, %s122
    %p131 = scmp.eq.s32.totalorder %s16, 1
    %p132 = por %p130, %p131
    %p133 = scmp.ne.s32.totalorder %s122, %s123
    %p134 = scmp.eq.s32.totalorder %s16, 0
    %p135 = por %p133, %p134
    %p136 = scmp.ne.s32.totalorder %s122, %s123
    %p137 = scmp.eq.s32.totalorder %s17, 1
    %p138 = por %p136, %p137
    %p140 = scmp.ne.s32.totalorder %s123, %s139
    %p141 = scmp.eq.s32.totalorder %s17, 0
    %p142 = por %p140, %p141
    %s143 = ssub.s32 %s18, %s30
    %s144 = ssub.s32 %s19, %s26
    %s145 = sor.u32 %s143, %s144
    %p146 = scmp.eq.s32.totalorder %s145, 0
    %s148 = sadd.s32 %s147, 1
    %s149 = scalar_select %p146, %s147, %s148
    %p152 = pneg %p146
    %p153 = scmp.eq.s32.totalorder %s11, 1
    %p154 = por %p152, %p153
    %p155 = scmp.ne.s32.totalorder %s147, %s150
    %p156 = scmp.eq.s32.totalorder %s11, 0
    %p157 = por %p155, %p156
    %p158 = scmp.ne.s32.totalorder %s147, %s150
    %p159 = scmp.eq.s32.totalorder %s16, 1
    %p160 = por %p158, %p159
    %p161 = scmp.ne.s32.totalorder %s150, %s151
    %p162 = scmp.eq.s32.totalorder %s16, 0
    %p163 = por %p161, %p162
    %p164 = scmp.ne.s32.totalorder %s150, %s151
    %p165 = scmp.eq.s32.totalorder %s17, 1
    %p166 = por %p164, %p165
    %p168 = scmp.ne.s32.totalorder %s151, %s167
    %p169 = scmp.eq.s32.totalorder %s17, 0
    %p170 = por %p168, %p169
    %p171 = scmp.le.s32.totalorder 1, %s11
    %p172 = scmp.lt.s32.totalorder %s11, 3
    %p173 = pnand %p171, %p172
    %p174 = pneg %p173
    // Predicated region
    $region9: #{tpu_custom_call.1} parent=5 // pred_check
      _
    $region10: #{tpu_custom_call.1} parent=5 // pred_check_branch
      %176 = sbr.rel (%p173) target = $region12
    $region11: #{tpu_custom_call.1} parent=5 // pred_region
      %s177 = ssub.s32 %s11, 1
    $region12: #{tpu_custom_call.1} parent=5 // pred_fallthru
      _
    %p178 = scmp.lt.s32.totalorder %s11, 2
    // Predicated region
    $region13: #{tpu_custom_call.1} parent=5 // pred_check
      %p179 = pneg %p178
    $region14: #{tpu_custom_call.1} parent=5 // pred_check_branch
      %181 = sbr.rel (%p179) target = $region16
    $region15: #{tpu_custom_call.1} parent=5 // pred_region
      // Predicated region
      $region17: #{tpu_custom_call.1} parent=15 // pred_check
        %p182 = pneg %p45
      $region18: #{tpu_custom_call.1} parent=15 // pred_check_branch
        %184 = sbr.rel (%p182) target = $region20
      $region19: #{tpu_custom_call.1} parent=15 // pred_region
        %p185 = scmp.lt.s32.totalorder %s18, 1
        %s186 = scalar_select %p185, %s18, 1
        %p187 = scmp.lt.s32.totalorder %s19, 0
        %s188 = scalar_select %p187, %s19, 0
        %s189 = smul.addr %s186, 32
        %s190 = sadd.s32 %s188, %s189
        %s191 = smul.addr %s190, 8
        %s192 = scalar_lea.vmem %s0, %s191
      $region20: #{tpu_custom_call.1} parent=15 // pred_fallthru
        _
    $region16: #{tpu_custom_call.1} parent=5 // pred_fallthru
      _
    %p193 = scmp.le.s32.totalorder 1, %s11
    %p194 = scmp.lt.s32.totalorder %s11, 3
    %p195 = pnand %p193, %p194
    %p196 = pneg %p195
    // Predicated region
    $region21: #{tpu_custom_call.1} parent=5 // pred_check
      _
    $region22: #{tpu_custom_call.1} parent=5 // pred_check_branch
      %198 = sbr.rel (%p195) target = $region24
    $region23: #{tpu_custom_call.1} parent=5 // pred_region
      %s199 = ssub.s32 %s11, 1
      %p200 = scmp.lt.s32.totalorder %s20, 1
      %s201 = scalar_select %p200, %s20, 1
      %p202 = scmp.lt.s32.totalorder %s21, 0
      %s203 = scalar_select %p202, %s21, 0
      %s204 = smul.addr %s201, 32
      %s205 = sadd.s32 %s203, %s204
      %s206 = smul.addr %s205, 8
      %s207 = scalar_lea.vmem %s0, %s206
      %p208 = pneg %p51
      %p209 = pneg %p48
      %p210 = pneg %p79
      %p211 = pneg %p76
      %p212 = scmp.lt.s32.totalorder %s20, 1
      %s213 = scalar_select %p212, %s20, 1
      %p214 = scmp.lt.s32.totalorder %s21, 0
      %s215 = scalar_select %p214, %s21, 0
      %s216 = smul.addr %s213, 32
      %s217 = sadd.s32 %s215, %s216
      %s218 = smul.addr %s217, 8
      %s219 = scalar_lea.vmem %s1, %s218
      %p220 = pneg %p107
      %p221 = pneg %p104
      %p222 = scmp.lt.s32.totalorder %s20, 1
      %s223 = scalar_select %p222, %s20, 1
      %p224 = scmp.lt.s32.totalorder %s21, 0
      %s225 = scalar_select %p224, %s21, 0
      %s226 = smul.addr %s223, 32
      %s227 = sadd.s32 %s225, %s226
      %s228 = smul.addr %s227, 8
      %s229 = scalar_lea.vmem %s2, %s228
      %p230 = pneg %p135
      %p231 = pneg %p132
      %p232 = scmp.lt.s32.totalorder %s20, 1
      %s233 = scalar_select %p232, %s20, 1
      %p234 = scmp.lt.s32.totalorder %s21, 0
      %s235 = scalar_select %p234, %s21, 0
      %s236 = smul.addr %s233, 32
      %s237 = sadd.s32 %s235, %s236
      %s238 = smul.addr %s237, 8
      %s239 = scalar_lea.vmem %s3, %s238
      %p240 = pneg %p163
      %p241 = pneg %p160
      %p242 = scmp.lt.s32.totalorder %s20, 1
      %s243 = scalar_select %p242, %s20, 1
      %p244 = scmp.lt.s32.totalorder %s21, 0
      %s245 = scalar_select %p244, %s21, 0
      %s246 = smul.addr %s243, 32
      %s247 = sadd.s32 %s245, %s246
      %s248 = smul.addr %s247, 8
      %s249 = scalar_lea.vmem %s4, %s248
      %p250 = scmp.lt.s32.totalorder %s20, 1
      %s251 = scalar_select %p250, %s20, 1
      %p252 = scmp.lt.s32.totalorder %s21, 0
      %s253 = scalar_select %p252, %s21, 0
      %s254 = smul.addr %s251, 32
      %s255 = sadd.s32 %s253, %s254
      %s256 = smul.addr %s255, 8
      %s257 = scalar_lea.vmem %s0, %s256
      %p258 = scmp.lt.s32.totalorder %s20, 1
      %s259 = scalar_select %p258, %s20, 1
      %p260 = scmp.lt.s32.totalorder %s21, 0
      %s261 = scalar_select %p260, %s21, 0
      %s262 = smul.addr %s259, 32
      %s263 = sadd.s32 %s261, %s262
      %s264 = smul.addr %s263, 8
      %s265 = scalar_lea.vmem %s1, %s264
      %p266 = scmp.lt.s32.totalorder %s20, 1
      %s267 = scalar_select %p266, %s20, 1
      %p268 = scmp.lt.s32.totalorder %s21, 0
      %s269 = scalar_select %p268, %s21, 0
      %s270 = smul.addr %s267, 32
      %s271 = sadd.s32 %s269, %s270
      %s272 = smul.addr %s271, 8
      %s273 = scalar_lea.vmem %s2, %s272
      %p274 = scmp.lt.s32.totalorder %s20, 1
      %s275 = scalar_select %p274, %s20, 1
      %p276 = scmp.lt.s32.totalorder %s21, 0
      %s277 = scalar_select %p276, %s21, 0
      %s278 = smul.addr %s275, 32
      %s279 = sadd.s32 %s277, %s278
      %s280 = smul.addr %s279, 8
      %s281 = scalar_lea.vmem %s3, %s280
      %p282 = scmp.lt.s32.totalorder %s20, 1
      %s283 = scalar_select %p282, %s20, 1
      %p284 = scmp.lt.s32.totalorder %s21, 0
      %s285 = scalar_select %p284, %s21, 0
      %s286 = smul.addr %s283, 32
      %s287 = sadd.s32 %s285, %s286
      %s288 = smul.addr %s287, 8
      %s289 = scalar_lea.vmem %s4, %s288
      %v290 = vld [vmem:[%s257] sm:$0xff]
      %v291 = vld [vmem:[%s257 + $0x8] sm:$0xff]
      %v292 = vld [vmem:[%s257 + $0x10] sm:$0xff]
      %v293 = vld [vmem:[%s257 + $0x18] sm:$0xff]
      %v294 = vld [vmem:[%s257 + $0x20] sm:$0xff]
      %v295 = vld [vmem:[%s257 + $0x28] sm:$0xff]
      %v296 = vld [vmem:[%s257 + $0x30] sm:$0xff]
      %v297 = vld [vmem:[%s257 + $0x38] sm:$0xff]
      %v298 = vld [vmem:[%s257 + $0x40] sm:$0xff]
      %v299 = vld [vmem:[%s257 + $0x48] sm:$0xff]
      %v300 = vld [vmem:[%s257 + $0x50] sm:$0xff]
      %v301 = vld [vmem:[%s257 + $0x58] sm:$0xff]
      %v302 = vld [vmem:[%s257 + $0x60] sm:$0xff]
      %v303 = vld [vmem:[%s257 + $0x68] sm:$0xff]
      %v304 = vld [vmem:[%s257 + $0x70] sm:$0xff]
      %v305 = vld [vmem:[%s257 + $0x78] sm:$0xff]
      %v306 = vld [vmem:[%s257 + $0x80] sm:$0xff]
      %v307 = vld [vmem:[%s257 + $0x88] sm:$0xff]
      %v308 = vld [vmem:[%s257 + $0x90] sm:$0xff]
      %v309 = vld [vmem:[%s257 + $0x98] sm:$0xff]
      %v310 = vld [vmem:[%s257 + $0xa0] sm:$0xff]
      %v311 = vld [vmem:[%s257 + $0xa8] sm:$0xff]
      %v312 = vld [vmem:[%s257 + $0xb0] sm:$0xff]
      %v313 = vld [vmem:[%s257 + $0xb8] sm:$0xff]
      %v314 = vld [vmem:[%s257 + $0xc0] sm:$0xff]
      %v315 = vld [vmem:[%s257 + $0xc8] sm:$0xff]
      %v316 = vld [vmem:[%s257 + $0xd0] sm:$0xff]
      %v317 = vld [vmem:[%s257 + $0xd8] sm:$0xff]
      %v318 = vld [vmem:[%s257 + $0xe0] sm:$0xff]
      %v319 = vld [vmem:[%s257 + $0xe8] sm:$0xff]
      %v320 = vld [vmem:[%s257 + $0xf0] sm:$0xff]
      %v321 = vld [vmem:[%s257 + $0xf8] sm:$0xff]
      %vm322 = vcmask 31744
      %323 = vst.msk [vmem:[%s265] sm:$0xff] %vm322, %v290
      %324 = vst.msk [vmem:[%s265 + $0x8] sm:$0xff] %vm322, %v291
      %325 = vst.msk [vmem:[%s265 + $0x10] sm:$0xff] %vm322, %v292
      %326 = vst.msk [vmem:[%s265 + $0x18] sm:$0xff] %vm322, %v293
      %327 = vst.msk [vmem:[%s265 + $0x20] sm:$0xff] %vm322, %v294
      %328 = vst.msk [vmem:[%s265 + $0x28] sm:$0xff] %vm322, %v295
      %329 = vst.msk [vmem:[%s265 + $0x30] sm:$0xff] %vm322, %v296
      %330 = vst.msk [vmem:[%s265 + $0x38] sm:$0xff] %vm322, %v297
      %331 = vst.msk [vmem:[%s265 + $0x40] sm:$0xff] %vm322, %v298
      %332 = vst.msk [vmem:[%s265 + $0x48] sm:$0xff] %vm322, %v299
      %333 = vst.msk [vmem:[%s265 + $0x50] sm:$0xff] %vm322, %v300
      %334 = vst.msk [vmem:[%s265 + $0x58] sm:$0xff] %vm322, %v301
      %335 = vst.msk [vmem:[%s265 + $0x60] sm:$0xff] %vm322, %v302
      %336 = vst.msk [vmem:[%s265 + $0x68] sm:$0xff] %vm322, %v303
      %337 = vst.msk [vmem:[%s265 + $0x70] sm:$0xff] %vm322, %v304
      %338 = vst.msk [vmem:[%s265 + $0x78] sm:$0xff] %vm322, %v305
      %339 = vst.msk [vmem:[%s265 + $0x80] sm:$0xff] %vm322, %v306
      %340 = vst.msk [vmem:[%s265 + $0x88] sm:$0xff] %vm322, %v307
      %341 = vst.msk [vmem:[%s265 + $0x90] sm:$0xff] %vm322, %v308
      %342 = vst.msk [vmem:[%s265 + $0x98] sm:$0xff] %vm322, %v309
      %343 = vst.msk [vmem:[%s265 + $0xa0] sm:$0xff] %vm322, %v310
      %344 = vst.msk [vmem:[%s265 + $0xa8] sm:$0xff] %vm322, %v311
      %345 = vst.msk [vmem:[%s265 + $0xb0] sm:$0xff] %vm322, %v312
      %346 = vst.msk [vmem:[%s265 + $0xb8] sm:$0xff] %vm322, %v313
      %347 = vst.msk [vmem:[%s265 + $0xc0] sm:$0xff] %vm322, %v314
      %348 = vst.msk [vmem:[%s265 + $0xc8] sm:$0xff] %vm322, %v315
      %349 = vst.msk [vmem:[%s265 + $0xd0] sm:$0xff] %vm322, %v316
      %350 = vst.msk [vmem:[%s265 + $0xd8] sm:$0xff] %vm322, %v317
      %351 = vst.msk [vmem:[%s265 + $0xe0] sm:$0xff] %vm322, %v318
      %352 = vst.msk [vmem:[%s265 + $0xe8] sm:$0xff] %vm322, %v319
      %353 = vst.msk [vmem:[%s265 + $0xf0] sm:$0xff] %vm322, %v320
      %354 = vst.msk [vmem:[%s265 + $0xf8] sm:$0xff] %vm322, %v321
      %355 = vst.msk [vmem:[#allocation2] sm:$0xff] %vm322, -inf
      %356 = vst.msk [vmem:[#allocation2 + $0x8] sm:$0xff] %vm322, -inf
      %vm357 = vcmask 25600
      %358 = vst.msk [vmem:[#allocation2 + $0x10] sm:$0x3] %vm357, -inf
      %s359 = scalar_lea.vmem [#allocation2], 408
      %360 = vst.msk [vmem:[%s359] sm:$0xff] %vm322, -inf
      %361 = vst.msk [vmem:[%s359 + $0x8] sm:$0xff] %vm322, -inf
      %362 = vst.msk [vmem:[%s359 + $0x10] sm:$0x3] %vm357, -inf
      %s363 = scalar_lea.vmem [#allocation2], 24
      %vm364 = vcmask 24576
      %365 = vst.msk [vmem:[%s363] sm:$0x1] %vm364, -inf
      %366 = vst.msk [vmem:[%s363 + $0x18] sm:$0x1] %vm364, -inf
      %367 = vst.msk [vmem:[%s363 + $0x30] sm:$0x1] %vm364, -inf
      %368 = vst.msk [vmem:[%s363 + $0x48] sm:$0x1] %vm364, -inf
      %369 = vst.msk [vmem:[%s363 + $0x60] sm:$0x1] %vm364, -inf
      %370 = vst.msk [vmem:[%s363 + $0x78] sm:$0x1] %vm364, -inf
      %371 = vst.msk [vmem:[%s363 + $0x90] sm:$0x1] %vm364, -inf
      %372 = vst.msk [vmem:[%s363 + $0xa8] sm:$0x1] %vm364, -inf
      %373 = vst.msk [vmem:[%s363 + $0xc0] sm:$0x1] %vm364, -inf
      %374 = vst.msk [vmem:[%s363 + $0xd8] sm:$0x1] %vm364, -inf
      %375 = vst.msk [vmem:[%s363 + $0xf0] sm:$0x1] %vm364, -inf
      %376 = vst.msk [vmem:[%s363 + $0x108] sm:$0x1] %vm364, -inf
      %377 = vst.msk [vmem:[%s363 + $0x120] sm:$0x1] %vm364, -inf
      %378 = vst.msk [vmem:[%s363 + $0x138] sm:$0x1] %vm364, -inf
      %379 = vst.msk [vmem:[%s363 + $0x150] sm:$0x1] %vm364, -inf
      %380 = vst.msk [vmem:[%s363 + $0x168] sm:$0x1] %vm364, -inf
      %381 = vst.msk [vmem:[%s363 + $0x11] sm:$0x1] %vm364, -inf
      %382 = vst.msk [vmem:[%s363 + $0x29] sm:$0x1] %vm364, -inf
      %383 = vst.msk [vmem:[%s363 + $0x41] sm:$0x1] %vm364, -inf
      %384 = vst.msk [vmem:[%s363 + $0x59] sm:$0x1] %vm364, -inf
      %385 = vst.msk [vmem:[%s363 + $0x71] sm:$0x1] %vm364, -inf
      %386 = vst.msk [vmem:[%s363 + $0x89] sm:$0x1] %vm364, -inf
      %387 = vst.msk [vmem:[%s363 + $0xa1] sm:$0x1] %vm364, -inf
      %388 = vst.msk [vmem:[%s363 + $0xb9] sm:$0x1] %vm364, -inf
      %389 = vst.msk [vmem:[%s363 + $0xd1] sm:$0x1] %vm364, -inf
      %390 = vst.msk [vmem:[%s363 + $0xe9] sm:$0x1] %vm364, -inf
      %391 = vst.msk [vmem:[%s363 + $0x101] sm:$0x1] %vm364, -inf
      %392 = vst.msk [vmem:[%s363 + $0x119] sm:$0x1] %vm364, -inf
      %393 = vst.msk [vmem:[%s363 + $0x131] sm:$0x1] %vm364, -inf
      %394 = vst.msk [vmem:[%s363 + $0x149] sm:$0x1] %vm364, -inf
      %395 = vst.msk [vmem:[%s363 + $0x161] sm:$0x1] %vm364, -inf
      %396 = vst.msk [vmem:[%s363 + $0x179] sm:$0x1] %vm364, -inf
      %397 = vst.msk [vmem:[%s363 + $0x1] sm:$0xff] %vm322, %v290
      %398 = vst.msk [vmem:[%s363 + $0x9] sm:$0xff] %vm322, %v291
      %399 = vst.msk [vmem:[%s363 + $0x19] sm:$0xff] %vm322, %v292
      %400 = vst.msk [vmem:[%s363 + $0x21] sm:$0xff] %vm322, %v293
      %401 = vst.msk [vmem:[%s363 + $0x31] sm:$0xff] %vm322, %v294
      %402 = vst.msk [vmem:[%s363 + $0x39] sm:$0xff] %vm322, %v295
      %403 = vst.msk [vmem:[%s363 + $0x49] sm:$0xff] %vm322, %v296
      %404 = vst.msk [vmem:[%s363 + $0x51] sm:$0xff] %vm322, %v297
      %405 = vst.msk [vmem:[%s363 + $0x61] sm:$0xff] %vm322, %v298
      %406 = vst.msk [vmem:[%s363 + $0x69] sm:$0xff] %vm322, %v299
      %407 = vst.msk [vmem:[%s363 + $0x79] sm:$0xff] %vm322, %v300
      %408 = vst.msk [vmem:[%s363 + $0x81] sm:$0xff] %vm322, %v301
      %409 = vst.msk [vmem:[%s363 + $0x91] sm:$0xff] %vm322, %v302
      %410 = vst.msk [vmem:[%s363 + $0x99] sm:$0xff] %vm322, %v303
      %411 = vst.msk [vmem:[%s363 + $0xa9] sm:$0xff] %vm322, %v304
      %412 = vst.msk [vmem:[%s363 + $0xb1] sm:$0xff] %vm322, %v305
      %413 = vst.msk [vmem:[%s363 + $0xc1] sm:$0xff] %vm322, %v306
      %414 = vst.msk [vmem:[%s363 + $0xc9] sm:$0xff] %vm322, %v307
      %415 = vst.msk [vmem:[%s363 + $0xd9] sm:$0xff] %vm322, %v308
      %416 = vst.msk [vmem:[%s363 + $0xe1] sm:$0xff] %vm322, %v309
      %417 = vst.msk [vmem:[%s363 + $0xf1] sm:$0xff] %vm322, %v310
      %418 = vst.msk [vmem:[%s363 + $0xf9] sm:$0xff] %vm322, %v311
      %419 = vst.msk [vmem:[%s363 + $0x109] sm:$0xff] %vm322, %v312
      %420 = vst.msk [vmem:[%s363 + $0x111] sm:$0xff] %vm322, %v313
      %421 = vst.msk [vmem:[%s363 + $0x121] sm:$0xff] %vm322, %v314
      %422 = vst.msk [vmem:[%s363 + $0x129] sm:$0xff] %vm322, %v315
      %423 = vst.msk [vmem:[%s363 + $0x139] sm:$0xff] %vm322, %v316
      %424 = vst.msk [vmem:[%s363 + $0x141] sm:$0xff] %vm322, %v317
      %425 = vst.msk [vmem:[%s363 + $0x151] sm:$0xff] %vm322, %v318
      %426 = vst.msk [vmem:[%s363 + $0x159] sm:$0xff] %vm322, %v319
      %427 = vst.msk [vmem:[%s363 + $0x169] sm:$0xff] %vm322, %v320
      %428 = vst.msk [vmem:[%s363 + $0x171] sm:$0xff] %vm322, %v321
      %v429 = vld [vmem:[#allocation2] sm:$0xff]
      %v430 = vld [vmem:[#allocation2 + $0x8] sm:$0xff]
      %v431 = vld [vmem:[#allocation2 + $0x10] sm:$0x3]
      %v432 = vld [vmem:[#allocation2 + $0x18] sm:$0xff]
      %v433 = vld [vmem:[#allocation2 + $0x20] sm:$0xff]
      %v434 = vld [vmem:[#allocation2 + $0x28] sm:$0x3]
      %v435 = vld [vmem:[#allocation2 + $0x30] sm:$0xff]
      %v436 = vld [vmem:[#allocation2 + $0x38] sm:$0xff]
      %v437 = vld [vmem:[#allocation2 + $0x40] sm:$0x3]
      %v438 = vld [vmem:[#allocation2 + $0x48] sm:$0xff]
      %v439 = vld [vmem:[#allocation2 + $0x50] sm:$0xff]
      %v440 = vld [vmem:[#allocation2 + $0x58] sm:$0x3]
      %v441 = vld [vmem:[#allocation2 + $0x60] sm:$0xff]
      %v442 = vld [vmem:[#allocation2 + $0x68] sm:$0xff]
      %v443 = vld [vmem:[#allocation2 + $0x70] sm:$0x3]
      %v444 = vld [vmem:[#allocation2 + $0x78] sm:$0xff]
      %v445 = vld [vmem:[#allocation2 + $0x80] sm:$0xff]
      %v446 = vld [vmem:[#allocation2 + $0x88] sm:$0x3]
      %v447 = vld [vmem:[#allocation2 + $0x90] sm:$0xff]
      %v448 = vld [vmem:[#allocation2 + $0x98] sm:$0xff]
      %v449 = vld [vmem:[#allocation2 + $0xa0] sm:$0x3]
      %v450 = vld [vmem:[#allocation2 + $0xa8] sm:$0xff]
      %v451 = vld [vmem:[#allocation2 + $0xb0] sm:$0xff]
      %v452 = vld [vmem:[#allocation2 + $0xb8] sm:$0x3]
      %v453 = vld [vmem:[#allocation2 + $0xc0] sm:$0xff]
      %v454 = vld [vmem:[#allocation2 + $0xc8] sm:$0xff]
      %v455 = vld [vmem:[#allocation2 + $0xd0] sm:$0x3]
      %v456 = vld [vmem:[#allocation2 + $0xd8] sm:$0xff]
      %v457 = vld [vmem:[#allocation2 + $0xe0] sm:$0xff]
      %v458 = vld [vmem:[#allocation2 + $0xe8] sm:$0x3]
      %v459 = vld [vmem:[#allocation2 + $0xf0] sm:$0xff]
      %v460 = vld [vmem:[#allocation2 + $0xf8] sm:$0xff]
      %v461 = vld [vmem:[#allocation2 + $0x100] sm:$0x3]
      %v462 = vld [vmem:[#allocation2 + $0x108] sm:$0xff]
      %v463 = vld [vmem:[#allocation2 + $0x110] sm:$0xff]
      %v464 = vld [vmem:[#allocation2 + $0x118] sm:$0x3]
      %v465 = vld [vmem:[#allocation2 + $0x120] sm:$0xff]
      %v466 = vld [vmem:[#allocation2 + $0x128] sm:$0xff]
      %v467 = vld [vmem:[#allocation2 + $0x130] sm:$0x3]
      %v468 = vld [vmem:[#allocation2 + $0x138] sm:$0xff]
      %v469 = vld [vmem:[#allocation2 + $0x140] sm:$0xff]
      %v470 = vld [vmem:[#allocation2 + $0x148] sm:$0x3]
      %v471 = vld [vmem:[#allocation2 + $0x150] sm:$0xff]
      %v472 = vld [vmem:[#allocation2 + $0x158] sm:$0xff]
      %v473 = vld [vmem:[#allocation2 + $0x160] sm:$0x3]
      %v474 = vld [vmem:[#allocation2 + $0x168] sm:$0xff]
      %v475 = vld [vmem:[#allocation2 + $0x170] sm:$0xff]
      %v476 = vld [vmem:[#allocation2 + $0x178] sm:$0x3]
      %v477 = vld [vmem:[%s363] sm:$0xff]
      %v478 = vld [vmem:[%s363 + $0x8] sm:$0xff]
      %v479 = vld [vmem:[%s363 + $0x10] sm:$0x3]
      %v480 = vld [vmem:[%s363 + $0x18] sm:$0xff]
      %v481 = vld [vmem:[%s363 + $0x20] sm:$0xff]
      %v482 = vld [vmem:[%s363 + $0x28] sm:$0x3]
      %v483 = vld [vmem:[%s363 + $0x30] sm:$0xff]
      %v484 = vld [vmem:[%s363 + $0x38] sm:$0xff]
      %v485 = vld [vmem:[%s363 + $0x40] sm:$0x3]
      %v486 = vld [vmem:[%s363 + $0x48] sm:$0xff]
      %v487 = vld [vmem:[%s363 + $0x50] sm:$0xff]
      %v488 = vld [vmem:[%s363 + $0x58] sm:$0x3]
      %v489 = vld [vmem:[%s363 + $0x60] sm:$0xff]
      %v490 = vld [vmem:[%s363 + $0x68] sm:$0xff]
      %v491 = vld [vmem:[%s363 + $0x70] sm:$0x3]
      %v492 = vld [vmem:[%s363 + $0x78] sm:$0xff]
      %v493 = vld [vmem:[%s363 + $0x80] sm:$0xff]
      %v494 = vld [vmem:[%s363 + $0x88] sm:$0x3]
      %v495 = vld [vmem:[%s363 + $0x90] sm:$0xff]
      %v496 = vld [vmem:[%s363 + $0x98] sm:$0xff]
      %v497 = vld [vmem:[%s363 + $0xa0] sm:$0x3]
      %v498 = vld [vmem:[%s363 + $0xa8] sm:$0xff]
      %v499 = vld [vmem:[%s363 + $0xb0] sm:$0xff]
      %v500 = vld [vmem:[%s363 + $0xb8] sm:$0x3]
      %v501 = vld [vmem:[%s363 + $0xc0] sm:$0xff]
      %v502 = vld [vmem:[%s363 + $0xc8] sm:$0xff]
      %v503 = vld [vmem:[%s363 + $0xd0] sm:$0x3]
      %v504 = vld [vmem:[%s363 + $0xd8] sm:$0xff]
      %v505 = vld [vmem:[%s363 + $0xe0] sm:$0xff]
      %v506 = vld [vmem:[%s363 + $0xe8] sm:$0x3]
      %v507 = vld [vmem:[%s363 + $0xf0] sm:$0xff]
      %v508 = vld [vmem:[%s363 + $0xf8] sm:$0xff]
      %v509 = vld [vmem:[%s363 + $0x100] sm:$0x3]
      %v510 = vld [vmem:[%s363 + $0x108] sm:$0xff]
      %v511 = vld [vmem:[%s363 + $0x110] sm:$0xff]
      %v512 = vld [vmem:[%s363 + $0x118] sm:$0x3]
      %v513 = vld [vmem:[%s363 + $0x120] sm:$0xff]
      %v514 = vld [vmem:[%s363 + $0x128] sm:$0xff]
      %v515 = vld [vmem:[%s363 + $0x130] sm:$0x3]
      %v516 = vld [vmem:[%s363 + $0x138] sm:$0xff]
      %v517 = vld [vmem:[%s363 + $0x140] sm:$0xff]
      %v518 = vld [vmem:[%s363 + $0x148] sm:$0x3]
      %v519 = vld [vmem:[%s363 + $0x150] sm:$0xff]
      %v520 = vld [vmem:[%s363 + $0x158] sm:$0xff]
      %v521 = vld [vmem:[%s363 + $0x160] sm:$0x3]
      %v522 = vld [vmem:[%s363 + $0x168] sm:$0xff]
      %v523 = vld [vmem:[%s363 + $0x170] sm:$0xff]
      %v524 = vld [vmem:[%s363 + $0x178] sm:$0x3]
      %v525 = vmax.f32 %v429, %v477
      %v526 = vmax.f32 %v430, %v478
      %v527 = vmax.f32 %v431, %v479
      %v528 = vmax.f32 %v432, %v480
      %v529 = vmax.f32 %v433, %v481
      %v530 = vmax.f32 %v434, %v482
      %v531 = vmax.f32 %v435, %v483
      %v532 = vmax.f32 %v436, %v484
      %v533 = vmax.f32 %v437, %v485
      %v534 = vmax.f32 %v438, %v486
      %v535 = vmax.f32 %v439, %v487
      %v536 = vmax.f32 %v440, %v488
      %v537 = vmax.f32 %v441, %v489
      %v538 = vmax.f32 %v442, %v490
      %v539 = vmax.f32 %v443, %v491
      %v540 = vmax.f32 %v444, %v492
      %v541 = vmax.f32 %v445, %v493
      %v542 = vmax.f32 %v446, %v494
      %v543 = vmax.f32 %v447, %v495
      %v544 = vmax.f32 %v448, %v496
      %v545 = vmax.f32 %v449, %v497
      %v546 = vmax.f32 %v450, %v498
      %v547 = vmax.f32 %v451, %v499
      %v548 = vmax.f32 %v452, %v500
      %v549 = vmax.f32 %v453, %v501
      %v550 = vmax.f32 %v454, %v502
      %v551 = vmax.f32 %v455, %v503
      %v552 = vmax.f32 %v456, %v504
      %v553 = vmax.f32 %v457, %v505
      %v554 = vmax.f32 %v458, %v506
      %v555 = vmax.f32 %v459, %v507
      %v556 = vmax.f32 %v460, %v508
      %v557 = vmax.f32 %v461, %v509
      %v558 = vmax.f32 %v462, %v510
      %v559 = vmax.f32 %v463, %v511
      %v560 = vmax.f32 %v464, %v512
      %v561 = vmax.f32 %v465, %v513
      %v562 = vmax.f32 %v466, %v514
      %v563 = vmax.f32 %v467, %v515
      %v564 = vmax.f32 %v468, %v516
      %v565 = vmax.f32 %v469, %v517
      %v566 = vmax.f32 %v470, %v518
      %v567 = vmax.f32 %v471, %v519
      %v568 = vmax.f32 %v472, %v520
      %v569 = vmax.f32 %v473, %v521
      %v570 = vmax.f32 %v474, %v522
      %v571 = vmax.f32 %v475, %v523
      %v572 = vmax.f32 %v476, %v524
      %s573 = scalar_lea.vmem [#allocation2], 48
      %v574 = vld [vmem:[%s573] sm:$0xff]
      %v575 = vld [vmem:[%s573 + $0x8] sm:$0xff]
      %v576 = vld [vmem:[%s573 + $0x10] sm:$0x3]
      %v577 = vld [vmem:[%s573 + $0x18] sm:$0xff]
      %v578 = vld [vmem:[%s573 + $0x20] sm:$0xff]
      %v579 = vld [vmem:[%s573 + $0x28] sm:$0x3]
      %v580 = vld [vmem:[%s573 + $0x30] sm:$0xff]
      %v581 = vld [vmem:[%s573 + $0x38] sm:$0xff]
      %v582 = vld [vmem:[%s573 + $0x40] sm:$0x3]
      %v583 = vld [vmem:[%s573 + $0x48] sm:$0xff]
      %v584 = vld [vmem:[%s573 + $0x50] sm:$0xff]
      %v585 = vld [vmem:[%s573 + $0x58] sm:$0x3]
      %v586 = vld [vmem:[%s573 + $0x60] sm:$0xff]
      %v587 = vld [vmem:[%s573 + $0x68] sm:$0xff]
      %v588 = vld [vmem:[%s573 + $0x70] sm:$0x3]
      %v589 = vld [vmem:[%s573 + $0x78] sm:$0xff]
      %v590 = vld [vmem:[%s573 + $0x80] sm:$0xff]
      %v591 = vld [vmem:[%s573 + $0x88] sm:$0x3]
      %v592 = vld [vmem:[%s573 + $0x90] sm:$0xff]
      %v593 = vld [vmem:[%s573 + $0x98] sm:$0xff]
      %v594 = vld [vmem:[%s573 + $0xa0] sm:$0x3]
      %v595 = vld [vmem:[%s573 + $0xa8] sm:$0xff]
      %v596 = vld [vmem:[%s573 + $0xb0] sm:$0xff]
      %v597 = vld [vmem:[%s573 + $0xb8] sm:$0x3]
      %v598 = vld [vmem:[%s573 + $0xc0] sm:$0xff]
      %v599 = vld [vmem:[%s573 + $0xc8] sm:$0xff]
      %v600 = vld [vmem:[%s573 + $0xd0] sm:$0x3]
      %v601 = vld [vmem:[%s573 + $0xd8] sm:$0xff]
      %v602 = vld [vmem:[%s573 + $0xe0] sm:$0xff]
      %v603 = vld [vmem:[%s573 + $0xe8] sm:$0x3]
      %v604 = vld [vmem:[%s573 + $0xf0] sm:$0xff]
      %v605 = vld [vmem:[%s573 + $0xf8] sm:$0xff]
      %v606 = vld [vmem:[%s573 + $0x100] sm:$0x3]
      %v607 = vld [vmem:[%s573 + $0x108] sm:$0xff]
      %v608 = vld [vmem:[%s573 + $0x110] sm:$0xff]
      %v609 = vld [vmem:[%s573 + $0x118] sm:$0x3]
      %v610 = vld [vmem:[%s573 + $0x120] sm:$0xff]
      %v611 = vld [vmem:[%s573 + $0x128] sm:$0xff]
      %v612 = vld [vmem:[%s573 + $0x130] sm:$0x3]
      %v613 = vld [vmem:[%s573 + $0x138] sm:$0xff]
      %v614 = vld [vmem:[%s573 + $0x140] sm:$0xff]
      %v615 = vld [vmem:[%s573 + $0x148] sm:$0x3]
      %v616 = vld [vmem:[%s573 + $0x150] sm:$0xff]
      %v617 = vld [vmem:[%s573 + $0x158] sm:$0xff]
      %v618 = vld [vmem:[%s573 + $0x160] sm:$0x3]
      %v619 = vld [vmem:[%s573 + $0x168] sm:$0xff]
      %v620 = vld [vmem:[%s573 + $0x170] sm:$0xff]
      %v621 = vld [vmem:[%s573 + $0x178] sm:$0x3]
      %v622 = vmax.f32 %v525, %v574
      %v623 = vmax.f32 %v526, %v575
      %v624 = vmax.f32 %v527, %v576
      %v625 = vmax.f32 %v528, %v577
      %v626 = vmax.f32 %v529, %v578
      %v627 = vmax.f32 %v530, %v579
      %v628 = vmax.f32 %v531, %v580
      %v629 = vmax.f32 %v532, %v581
      %v630 = vmax.f32 %v533, %v582
      %v631 = vmax.f32 %v534, %v583
      %v632 = vmax.f32 %v535, %v584
      %v633 = vmax.f32 %v536, %v585
      %v634 = vmax.f32 %v537, %v586
      %v635 = vmax.f32 %v538, %v587
      %v636 = vmax.f32 %v539, %v588
      %v637 = vmax.f32 %v540, %v589
      %v638 = vmax.f32 %v541, %v590
      %v639 = vmax.f32 %v542, %v591
      %v640 = vmax.f32 %v543, %v592
      %v641 = vmax.f32 %v544, %v593
      %v642 = vmax.f32 %v545, %v594
      %v643 = vmax.f32 %v546, %v595
      %v644 = vmax.f32 %v547, %v596
      %v645 = vmax.f32 %v548, %v597
      %v646 = vmax.f32 %v549, %v598
      %v647 = vmax.f32 %v550, %v599
      %v648 = vmax.f32 %v551, %v600
      %v649 = vmax.f32 %v552, %v601
      %v650 = vmax.f32 %v553, %v602
      %v651 = vmax.f32 %v554, %v603
      %v652 = vmax.f32 %v555, %v604
      %v653 = vmax.f32 %v556, %v605
      %v654 = vmax.f32 %v557, %v606
      %v655 = vmax.f32 %v558, %v607
      %v656 = vmax.f32 %v559, %v608
      %v657 = vmax.f32 %v560, %v609
      %v658 = vmax.f32 %v561, %v610
      %v659 = vmax.f32 %v562, %v611
      %v660 = vmax.f32 %v563, %v612
      %v661 = vmax.f32 %v564, %v613
      %v662 = vmax.f32 %v565, %v614
      %v663 = vmax.f32 %v566, %v615
      %v664 = vmax.f32 %v567, %v616
      %v665 = vmax.f32 %v568, %v617
      %v666 = vmax.f32 %v569, %v618
      %v667 = vmax.f32 %v570, %v619
      %v668 = vmax.f32 %v571, %v620
      %v669 = vmax.f32 %v572, %v621
      %vm718 = vcmask 1046528
      %v719 = vrot.slane %v622, 1
      %v720 = vrot.slane %v623, 1
      %v721 = vsel %vm718, %v719, %v720
      %v722 = vrot.slane %v624, 1
      %v723 = vsel %vm718, %v720, %v722
      %v724 = vrot.slane %v625, 1
      %v725 = vrot.slane %v626, 1
      %v726 = vsel %vm718, %v724, %v725
      %v727 = vrot.slane %v627, 1
      %v728 = vsel %vm718, %v725, %v727
      %v729 = vrot.slane %v628, 1
      %v730 = vrot.slane %v629, 1
      %v731 = vsel %vm718, %v729, %v730
      %v732 = vrot.slane %v630, 1
      %v733 = vsel %vm718, %v730, %v732
      %v734 = vrot.slane %v631, 1
      %v735 = vrot.slane %v632, 1
      %v736 = vsel %vm718, %v734, %v735
      %v737 = vrot.slane %v633, 1
      %v738 = vsel %vm718, %v735, %v737
      %v739 = vrot.slane %v634, 1
      %v740 = vrot.slane %v635, 1
      %v741 = vsel %vm718, %v739, %v740
      %v742 = vrot.slane %v636, 1
      %v743 = vsel %vm718, %v740, %v742
      %v744 = vrot.slane %v637, 1
      %v745 = vrot.slane %v638, 1
      %v746 = vsel %vm718, %v744, %v745
      %v747 = vrot.slane %v639, 1
      %v748 = vsel %vm718, %v745, %v747
      %v749 = vrot.slane %v640, 1
      %v750 = vrot.slane %v641, 1
      %v751 = vsel %vm718, %v749, %v750
      %v752 = vrot.slane %v642, 1
      %v753 = vsel %vm718, %v750, %v752
      %v754 = vrot.slane %v643, 1
      %v755 = vrot.slane %v644, 1
      %v756 = vsel %vm718, %v754, %v755
      %v757 = vrot.slane %v645, 1
      %v758 = vsel %vm718, %v755, %v757
      %v759 = vrot.slane %v646, 1
      %v760 = vrot.slane %v647, 1
      %v761 = vsel %vm718, %v759, %v760
      %v762 = vrot.slane %v648, 1
      %v763 = vsel %vm718, %v760, %v762
      %v764 = vrot.slane %v649, 1
      %v765 = vrot.slane %v650, 1
      %v766 = vsel %vm718, %v764, %v765
      %v767 = vrot.slane %v651, 1
      %v768 = vsel %vm718, %v765, %v767
      %v769 = vrot.slane %v652, 1
      %v770 = vrot.slane %v653, 1
      %v771 = vsel %vm718, %v769, %v770
      %v772 = vrot.slane %v654, 1
      %v773 = vsel %vm718, %v770, %v772
      %v774 = vrot.slane %v655, 1
      %v775 = vrot.slane %v656, 1
      %v776 = vsel %vm718, %v774, %v775
      %v777 = vrot.slane %v657, 1
      %v778 = vsel %vm718, %v775, %v777
      %v779 = vrot.slane %v658, 1
      %v780 = vrot.slane %v659, 1
      %v781 = vsel %vm718, %v779, %v780
      %v782 = vrot.slane %v660, 1
      %v783 = vsel %vm718, %v780, %v782
      %v784 = vrot.slane %v661, 1
      %v785 = vrot.slane %v662, 1
      %v786 = vsel %vm718, %v784, %v785
      %v787 = vrot.slane %v663, 1
      %v788 = vsel %vm718, %v785, %v787
      %v789 = vrot.slane %v664, 1
      %v790 = vrot.slane %v665, 1
      %v791 = vsel %vm718, %v789, %v790
      %v792 = vrot.slane %v666, 1
      %v793 = vsel %vm718, %v790, %v792
      %v794 = vrot.slane %v667, 1
      %v795 = vrot.slane %v668, 1
      %v796 = vsel %vm718, %v794, %v795
      %v797 = vrot.slane %v669, 1
      %v798 = vsel %vm718, %v795, %v797
      %v831 = vmax.f32 %v622, %v721
      %v832 = vmax.f32 %v623, %v723
      %v833 = vmax.f32 %v625, %v726
      %v834 = vmax.f32 %v626, %v728
      %v835 = vmax.f32 %v628, %v731
      %v836 = vmax.f32 %v629, %v733
      %v837 = vmax.f32 %v631, %v736
      %v838 = vmax.f32 %v632, %v738
      %v839 = vmax.f32 %v634, %v741
      %v840 = vmax.f32 %v635, %v743
      %v841 = vmax.f32 %v637, %v746
      %v842 = vmax.f32 %v638, %v748
      %v843 = vmax.f32 %v640, %v751
      %v844 = vmax.f32 %v641, %v753
      %v845 = vmax.f32 %v643, %v756
      %v846 = vmax.f32 %v644, %v758
      %v847 = vmax.f32 %v646, %v761
      %v848 = vmax.f32 %v647, %v763
      %v849 = vmax.f32 %v649, %v766
      %v850 = vmax.f32 %v650, %v768
      %v851 = vmax.f32 %v652, %v771
      %v852 = vmax.f32 %v653, %v773
      %v853 = vmax.f32 %v655, %v776
      %v854 = vmax.f32 %v656, %v778
      %v855 = vmax.f32 %v658, %v781
      %v856 = vmax.f32 %v659, %v783
      %v857 = vmax.f32 %v661, %v786
      %v858 = vmax.f32 %v662, %v788
      %v859 = vmax.f32 %v664, %v791
      %v860 = vmax.f32 %v665, %v793
      %v861 = vmax.f32 %v667, %v796
      %v862 = vmax.f32 %v668, %v798
      %vm863 = vcmask 1045504
      %v864 = vrot.slane %v622, 2
      %v865 = vrot.slane %v623, 2
      %v866 = vsel %vm863, %v864, %v865
      %v867 = vrot.slane %v624, 2
      %v868 = vsel %vm863, %v865, %v867
      %v869 = vrot.slane %v625, 2
      %v870 = vrot.slane %v626, 2
      %v871 = vsel %vm863, %v869, %v870
      %v872 = vrot.slane %v627, 2
      %v873 = vsel %vm863, %v870, %v872
      %v874 = vrot.slane %v628, 2
      %v875 = vrot.slane %v629, 2
      %v876 = vsel %vm863, %v874, %v875
      %v877 = vrot.slane %v630, 2
      %v878 = vsel %vm863, %v875, %v877
      %v879 = vrot.slane %v631, 2
      %v880 = vrot.slane %v632, 2
      %v881 = vsel %vm863, %v879, %v880
      %v882 = vrot.slane %v633, 2
      %v883 = vsel %vm863, %v880, %v882
      %v884 = vrot.slane %v634, 2
      %v885 = vrot.slane %v635, 2
      %v886 = vsel %vm863, %v884, %v885
      %v887 = vrot.slane %v636, 2
      %v888 = vsel %vm863, %v885, %v887
      %v889 = vrot.slane %v637, 2
      %v890 = vrot.slane %v638, 2
      %v891 = vsel %vm863, %v889, %v890
      %v892 = vrot.slane %v639, 2
      %v893 = vsel %vm863, %v890, %v892
      %v894 = vrot.slane %v640, 2
      %v895 = vrot.slane %v641, 2
      %v896 = vsel %vm863, %v894, %v895
      %v897 = vrot.slane %v642, 2
      %v898 = vsel %vm863, %v895, %v897
      %v899 = vrot.slane %v643, 2
      %v900 = vrot.slane %v644, 2
      %v901 = vsel %vm863, %v899, %v900
      %v902 = vrot.slane %v645, 2
      %v903 = vsel %vm863, %v900, %v902
      %v904 = vrot.slane %v646, 2
      %v905 = vrot.slane %v647, 2
      %v906 = vsel %vm863, %v904, %v905
      %v907 = vrot.slane %v648, 2
      %v908 = vsel %vm863, %v905, %v907
      %v909 = vrot.slane %v649, 2
      %v910 = vrot.slane %v650, 2
      %v911 = vsel %vm863, %v909, %v910
      %v912 = vrot.slane %v651, 2
      %v913 = vsel %vm863, %v910, %v912
      %v914 = vrot.slane %v652, 2
      %v915 = vrot.slane %v653, 2
      %v916 = vsel %vm863, %v914, %v915
      %v917 = vrot.slane %v654, 2
      %v918 = vsel %vm863, %v915, %v917
      %v919 = vrot.slane %v655, 2
      %v920 = vrot.slane %v656, 2
      %v921 = vsel %vm863, %v919, %v920
      %v922 = vrot.slane %v657, 2
      %v923 = vsel %vm863, %v920, %v922
      %v924 = vrot.slane %v658, 2
      %v925 = vrot.slane %v659, 2
      %v926 = vsel %vm863, %v924, %v925
      %v927 = vrot.slane %v660, 2
      %v928 = vsel %vm863, %v925, %v927
      %v929 = vrot.slane %v661, 2
      %v930 = vrot.slane %v662, 2
      %v931 = vsel %vm863, %v929, %v930
      %v932 = vrot.slane %v663, 2
      %v933 = vsel %vm863, %v930, %v932
      %v934 = vrot.slane %v664, 2
      %v935 = vrot.slane %v665, 2
      %v936 = vsel %vm863, %v934, %v935
      %v937 = vrot.slane %v666, 2
      %v938 = vsel %vm863, %v935, %v937
      %v939 = vrot.slane %v667, 2
      %v940 = vrot.slane %v668, 2
      %v941 = vsel %vm863, %v939, %v940
      %v942 = vrot.slane %v669, 2
      %v943 = vsel %vm863, %v940, %v942
      %v976 = vmax.f32 %v831, %v866
      %v977 = vmax.f32 %v832, %v868
      %v978 = vmax.f32 %v833, %v871
      %v979 = vmax.f32 %v834, %v873
      %v980 = vmax.f32 %v835, %v876
      %v981 = vmax.f32 %v836, %v878
      %v982 = vmax.f32 %v837, %v881
      %v983 = vmax.f32 %v838, %v883
      %v984 = vmax.f32 %v839, %v886
      %v985 = vmax.f32 %v840, %v888
      %v986 = vmax.f32 %v841, %v891
      %v987 = vmax.f32 %v842, %v893
      %v988 = vmax.f32 %v843, %v896
      %v989 = vmax.f32 %v844, %v898
      %v990 = vmax.f32 %v845, %v901
      %v991 = vmax.f32 %v846, %v903
      %v992 = vmax.f32 %v847, %v906
      %v993 = vmax.f32 %v848, %v908
      %v994 = vmax.f32 %v849, %v911
      %v995 = vmax.f32 %v850, %v913
      %v996 = vmax.f32 %v851, %v916
      %v997 = vmax.f32 %v852, %v918
      %v998 = vmax.f32 %v853, %v921
      %v999 = vmax.f32 %v854, %v923
      %v1000 = vmax.f32 %v855, %v926
      %v1001 = vmax.f32 %v856, %v928
      %v1002 = vmax.f32 %v857, %v931
      %v1003 = vmax.f32 %v858, %v933
      %v1004 = vmax.f32 %v859, %v936
      %v1005 = vmax.f32 %v860, %v938
      %v1006 = vmax.f32 %v861, %v941
      %v1007 = vmax.f32 %v862, %v943
      %1008 = vst.msk [vmem:[%s273] sm:$0xff] %vm322, %v976
      %1009 = vst.msk [vmem:[%s273 + $0x8] sm:$0xff] %vm322, %v977
      %1010 = vst.msk [vmem:[%s273 + $0x10] sm:$0xff] %vm322, %v978
      %1011 = vst.msk [vmem:[%s273 + $0x18] sm:$0xff] %vm322, %v979
      %1012 = vst.msk [vmem:[%s273 + $0x20] sm:$0xff] %vm322, %v980
      %1013 = vst.msk [vmem:[%s273 + $0x28] sm:$0xff] %vm322, %v981
      %1014 = vst.msk [vmem:[%s273 + $0x30] sm:$0xff] %vm322, %v982
      %1015 = vst.msk [vmem:[%s273 + $0x38] sm:$0xff] %vm322, %v983
      %1016 = vst.msk [vmem:[%s273 + $0x40] sm:$0xff] %vm322, %v984
      %1017 = vst.msk [vmem:[%s273 + $0x48] sm:$0xff] %vm322, %v985
      %1018 = vst.msk [vmem:[%s273 + $0x50] sm:$0xff] %vm322, %v986
      %1019 = vst.msk [vmem:[%s273 + $0x58] sm:$0xff] %vm322, %v987
      %1020 = vst.msk [vmem:[%s273 + $0x60] sm:$0xff] %vm322, %v988
      %1021 = vst.msk [vmem:[%s273 + $0x68] sm:$0xff] %vm322, %v989
      %1022 = vst.msk [vmem:[%s273 + $0x70] sm:$0xff] %vm322, %v990
      %1023 = vst.msk [vmem:[%s273 + $0x78] sm:$0xff] %vm322, %v991
      %1024 = vst.msk [vmem:[%s273 + $0x80] sm:$0xff] %vm322, %v992
      %1025 = vst.msk [vmem:[%s273 + $0x88] sm:$0xff] %vm322, %v993
      %1026 = vst.msk [vmem:[%s273 + $0x90] sm:$0xff] %vm322, %v994
      %1027 = vst.msk [vmem:[%s273 + $0x98] sm:$0xff] %vm322, %v995
      %1028 = vst.msk [vmem:[%s273 + $0xa0] sm:$0xff] %vm322, %v996
      %1029 = vst.msk [vmem:[%s273 + $0xa8] sm:$0xff] %vm322, %v997
      %1030 = vst.msk [vmem:[%s273 + $0xb0] sm:$0xff] %vm322, %v998
      %1031 = vst.msk [vmem:[%s273 + $0xb8] sm:$0xff] %vm322, %v999
      %1032 = vst.msk [vmem:[%s273 + $0xc0] sm:$0xff] %vm322, %v1000
      %1033 = vst.msk [vmem:[%s273 + $0xc8] sm:$0xff] %vm322, %v1001
      %1034 = vst.msk [vmem:[%s273 + $0xd0] sm:$0xff] %vm322, %v1002
      %1035 = vst.msk [vmem:[%s273 + $0xd8] sm:$0xff] %vm322, %v1003
      %1036 = vst.msk [vmem:[%s273 + $0xe0] sm:$0xff] %vm322, %v1004
      %1037 = vst.msk [vmem:[%s273 + $0xe8] sm:$0xff] %vm322, %v1005
      %1038 = vst.msk [vmem:[%s273 + $0xf0] sm:$0xff] %vm322, %v1006
      %1039 = vst.msk [vmem:[%s273 + $0xf8] sm:$0xff] %vm322, %v1007
      %1040 = vst.msk [vmem:[%s363 + $0x1] sm:$0xff] %vm322, %v976
      %1041 = vst.msk [vmem:[%s363 + $0x9] sm:$0xff] %vm322, %v977
      %1042 = vst.msk [vmem:[%s363 + $0x19] sm:$0xff] %vm322, %v978
      %1043 = vst.msk [vmem:[%s363 + $0x21] sm:$0xff] %vm322, %v979
      %1044 = vst.msk [vmem:[%s363 + $0x31] sm:$0xff] %vm322, %v980
      %1045 = vst.msk [vmem:[%s363 + $0x39] sm:$0xff] %vm322, %v981
      %1046 = vst.msk [vmem:[%s363 + $0x49] sm:$0xff] %vm322, %v982
      %1047 = vst.msk [vmem:[%s363 + $0x51] sm:$0xff] %vm322, %v983
      %1048 = vst.msk [vmem:[%s363 + $0x61] sm:$0xff] %vm322, %v984
      %1049 = vst.msk [vmem:[%s363 + $0x69] sm:$0xff] %vm322, %v985
      %1050 = vst.msk [vmem:[%s363 + $0x79] sm:$0xff] %vm322, %v986
      %1051 = vst.msk [vmem:[%s363 + $0x81] sm:$0xff] %vm322, %v987
      %1052 = vst.msk [vmem:[%s363 + $0x91] sm:$0xff] %vm322, %v988
      %1053 = vst.msk [vmem:[%s363 + $0x99] sm:$0xff] %vm322, %v989
      %1054 = vst.msk [vmem:[%s363 + $0xa9] sm:$0xff] %vm322, %v990
      %1055 = vst.msk [vmem:[%s363 + $0xb1] sm:$0xff] %vm322, %v991
      %1056 = vst.msk [vmem:[%s363 + $0xc1] sm:$0xff] %vm322, %v992
      %1057 = vst.msk [vmem:[%s363 + $0xc9] sm:$0xff] %vm322, %v993
      %1058 = vst.msk [vmem:[%s363 + $0xd9] sm:$0xff] %vm322, %v994
      %1059 = vst.msk [vmem:[%s363 + $0xe1] sm:$0xff] %vm322, %v995
      %1060 = vst.msk [vmem:[%s363 + $0xf1] sm:$0xff] %vm322, %v996
      %1061 = vst.msk [vmem:[%s363 + $0xf9] sm:$0xff] %vm322, %v997
      %1062 = vst.msk [vmem:[%s363 + $0x109] sm:$0xff] %vm322, %v998
      %1063 = vst.msk [vmem:[%s363 + $0x111] sm:$0xff] %vm322, %v999
      %1064 = vst.msk [vmem:[%s363 + $0x121] sm:$0xff] %vm322, %v1000
      %1065 = vst.msk [vmem:[%s363 + $0x129] sm:$0xff] %vm322, %v1001
      %1066 = vst.msk [vmem:[%s363 + $0x139] sm:$0xff] %vm322, %v1002
      %1067 = vst.msk [vmem:[%s363 + $0x141] sm:$0xff] %vm322, %v1003
      %1068 = vst.msk [vmem:[%s363 + $0x151] sm:$0xff] %vm322, %v1004
      %1069 = vst.msk [vmem:[%s363 + $0x159] sm:$0xff] %vm322, %v1005
      %1070 = vst.msk [vmem:[%s363 + $0x169] sm:$0xff] %vm322, %v1006
      %1071 = vst.msk [vmem:[%s363 + $0x171] sm:$0xff] %vm322, %v1007
      %v1072 = vld [vmem:[#allocation2] sm:$0xff]
      %v1073 = vld [vmem:[#allocation2 + $0x8] sm:$0xff]
      %v1074 = vld [vmem:[#allocation2 + $0x10] sm:$0x3]
      %v1075 = vld [vmem:[#allocation2 + $0x18] sm:$0xff]
      %v1076 = vld [vmem:[#allocation2 + $0x20] sm:$0xff]
      %v1077 = vld [vmem:[#allocation2 + $0x28] sm:$0x3]
      %v1078 = vld [vmem:[#allocation2 + $0x30] sm:$0xff]
      %v1079 = vld [vmem:[#allocation2 + $0x38] sm:$0xff]
      %v1080 = vld [vmem:[#allocation2 + $0x40] sm:$0x3]
      %v1081 = vld [vmem:[#allocation2 + $0x48] sm:$0xff]
      %v1082 = vld [vmem:[#allocation2 + $0x50] sm:$0xff]
      %v1083 = vld [vmem:[#allocation2 + $0x58] sm:$0x3]
      %v1084 = vld [vmem:[#allocation2 + $0x60] sm:$0xff]
      %v1085 = vld [vmem:[#allocation2 + $0x68] sm:$0xff]
      %v1086 = vld [vmem:[#allocation2 + $0x70] sm:$0x3]
      %v1087 = vld [vmem:[#allocation2 + $0x78] sm:$0xff]
      %v1088 = vld [vmem:[#allocation2 + $0x80] sm:$0xff]
      %v1089 = vld [vmem:[#allocation2 + $0x88] sm:$0x3]
      %v1090 = vld [vmem:[#allocation2 + $0x90] sm:$0xff]
      %v1091 = vld [vmem:[#allocation2 + $0x98] sm:$0xff]
      %v1092 = vld [vmem:[#allocation2 + $0xa0] sm:$0x3]
      %v1093 = vld [vmem:[#allocation2 + $0xa8] sm:$0xff]
      %v1094 = vld [vmem:[#allocation2 + $0xb0] sm:$0xff]
      %v1095 = vld [vmem:[#allocation2 + $0xb8] sm:$0x3]
      %v1096 = vld [vmem:[#allocation2 + $0xc0] sm:$0xff]
      %v1097 = vld [vmem:[#allocation2 + $0xc8] sm:$0xff]
      %v1098 = vld [vmem:[#allocation2 + $0xd0] sm:$0x3]
      %v1099 = vld [vmem:[#allocation2 + $0xd8] sm:$0xff]
      %v1100 = vld [vmem:[#allocation2 + $0xe0] sm:$0xff]
      %v1101 = vld [vmem:[#allocation2 + $0xe8] sm:$0x3]
      %v1102 = vld [vmem:[#allocation2 + $0xf0] sm:$0xff]
      %v1103 = vld [vmem:[#allocation2 + $0xf8] sm:$0xff]
      %v1104 = vld [vmem:[#allocation2 + $0x100] sm:$0x3]
      %v1105 = vld [vmem:[#allocation2 + $0x108] sm:$0xff]
      %v1106 = vld [vmem:[#allocation2 + $0x110] sm:$0xff]
      %v1107 = vld [vmem:[#allocation2 + $0x118] sm:$0x3]
      %v1108 = vld [vmem:[#allocation2 + $0x120] sm:$0xff]
      %v1109 = vld [vmem:[#allocation2 + $0x128] sm:$0xff]
      %v1110 = vld [vmem:[#allocation2 + $0x130] sm:$0x3]
      %v1111 = vld [vmem:[#allocation2 + $0x138] sm:$0xff]
      %v1112 = vld [vmem:[#allocation2 + $0x140] sm:$0xff]
      %v1113 = vld [vmem:[#allocation2 + $0x148] sm:$0x3]
      %v1114 = vld [vmem:[#allocation2 + $0x150] sm:$0xff]
      %v1115 = vld [vmem:[#allocation2 + $0x158] sm:$0xff]
      %v1116 = vld [vmem:[#allocation2 + $0x160] sm:$0x3]
      %v1117 = vld [vmem:[#allocation2 + $0x168] sm:$0xff]
      %v1118 = vld [vmem:[#allocation2 + $0x170] sm:$0xff]
      %v1119 = vld [vmem:[#allocation2 + $0x178] sm:$0x3]
      %v1120 = vld [vmem:[%s363] sm:$0xff]
      %v1121 = vld [vmem:[%s363 + $0x8] sm:$0xff]
      %v1122 = vld [vmem:[%s363 + $0x10] sm:$0x3]
      %v1123 = vld [vmem:[%s363 + $0x18] sm:$0xff]
      %v1124 = vld [vmem:[%s363 + $0x20] sm:$0xff]
      %v1125 = vld [vmem:[%s363 + $0x28] sm:$0x3]
      %v1126 = vld [vmem:[%s363 + $0x30] sm:$0xff]
      %v1127 = vld [vmem:[%s363 + $0x38] sm:$0xff]
      %v1128 = vld [vmem:[%s363 + $0x40] sm:$0x3]
      %v1129 = vld [vmem:[%s363 + $0x48] sm:$0xff]
      %v1130 = vld [vmem:[%s363 + $0x50] sm:$0xff]
      %v1131 = vld [vmem:[%s363 + $0x58] sm:$0x3]
      %v1132 = vld [vmem:[%s363 + $0x60] sm:$0xff]
      %v1133 = vld [vmem:[%s363 + $0x68] sm:$0xff]
      %v1134 = vld [vmem:[%s363 + $0x70] sm:$0x3]
      %v1135 = vld [vmem:[%s363 + $0x78] sm:$0xff]
      %v1136 = vld [vmem:[%s363 + $0x80] sm:$0xff]
      %v1137 = vld [vmem:[%s363 + $0x88] sm:$0x3]
      %v1138 = vld [vmem:[%s363 + $0x90] sm:$0xff]
      %v1139 = vld [vmem:[%s363 + $0x98] sm:$0xff]
      %v1140 = vld [vmem:[%s363 + $0xa0] sm:$0x3]
      %v1141 = vld [vmem:[%s363 + $0xa8] sm:$0xff]
      %v1142 = vld [vmem:[%s363 + $0xb0] sm:$0xff]
      %v1143 = vld [vmem:[%s363 + $0xb8] sm:$0x3]
      %v1144 = vld [vmem:[%s363 + $0xc0] sm:$0xff]
      %v1145 = vld [vmem:[%s363 + $0xc8] sm:$0xff]
      %v1146 = vld [vmem:[%s363 + $0xd0] sm:$0x3]
      %v1147 = vld [vmem:[%s363 + $0xd8] sm:$0xff]
      %v1148 = vld [vmem:[%s363 + $0xe0] sm:$0xff]
      %v1149 = vld [vmem:[%s363 + $0xe8] sm:$0x3]
      %v1150 = vld [vmem:[%s363 + $0xf0] sm:$0xff]
      %v1151 = vld [vmem:[%s363 + $0xf8] sm:$0xff]
      %v1152 = vld [vmem:[%s363 + $0x100] sm:$0x3]
      %v1153 = vld [vmem:[%s363 + $0x108] sm:$0xff]
      %v1154 = vld [vmem:[%s363 + $0x110] sm:$0xff]
      %v1155 = vld [vmem:[%s363 + $0x118] sm:$0x3]
      %v1156 = vld [vmem:[%s363 + $0x120] sm:$0xff]
      %v1157 = vld [vmem:[%s363 + $0x128] sm:$0xff]
      %v1158 = vld [vmem:[%s363 + $0x130] sm:$0x3]
      %v1159 = vld [vmem:[%s363 + $0x138] sm:$0xff]
      %v1160 = vld [vmem:[%s363 + $0x140] sm:$0xff]
      %v1161 = vld [vmem:[%s363 + $0x148] sm:$0x3]
      %v1162 = vld [vmem:[%s363 + $0x150] sm:$0xff]
      %v1163 = vld [vmem:[%s363 + $0x158] sm:$0xff]
      %v1164 = vld [vmem:[%s363 + $0x160] sm:$0x3]
      %v1165 = vld [vmem:[%s363 + $0x168] sm:$0xff]
      %v1166 = vld [vmem:[%s363 + $0x170] sm:$0xff]
      %v1167 = vld [vmem:[%s363 + $0x178] sm:$0x3]
      %v1168 = vmax.f32 %v1072, %v1120
      %v1169 = vmax.f32 %v1073, %v1121
      %v1170 = vmax.f32 %v1074, %v1122
      %v1171 = vmax.f32 %v1075, %v1123
      %v1172 = vmax.f32 %v1076, %v1124
      %v1173 = vmax.f32 %v1077, %v1125
      %v1174 = vmax.f32 %v1078, %v1126
      %v1175 = vmax.f32 %v1079, %v1127
      %v1176 = vmax.f32 %v1080, %v1128
      %v1177 = vmax.f32 %v1081, %v1129
      %v1178 = vmax.f32 %v1082, %v1130
      %v1179 = vmax.f32 %v1083, %v1131
      %v1180 = vmax.f32 %v1084, %v1132
      %v1181 = vmax.f32 %v1085, %v1133
      %v1182 = vmax.f32 %v1086, %v1134
      %v1183 = vmax.f32 %v1087, %v1135
      %v1184 = vmax.f32 %v1088, %v1136
      %v1185 = vmax.f32 %v1089, %v1137
      %v1186 = vmax.f32 %v1090, %v1138
      %v1187 = vmax.f32 %v1091, %v1139
      %v1188 = vmax.f32 %v1092, %v1140
      %v1189 = vmax.f32 %v1093, %v1141
      %v1190 = vmax.f32 %v1094, %v1142
      %v1191 = vmax.f32 %v1095, %v1143
      %v1192 = vmax.f32 %v1096, %v1144
      %v1193 = vmax.f32 %v1097, %v1145
      %v1194 = vmax.f32 %v1098, %v1146
      %v1195 = vmax.f32 %v1099, %v1147
      %v1196 = vmax.f32 %v1100, %v1148
      %v1197 = vmax.f32 %v1101, %v1149
      %v1198 = vmax.f32 %v1102, %v1150
      %v1199 = vmax.f32 %v1103, %v1151
      %v1200 = vmax.f32 %v1104, %v1152
      %v1201 = vmax.f32 %v1105, %v1153
      %v1202 = vmax.f32 %v1106, %v1154
      %v1203 = vmax.f32 %v1107, %v1155
      %v1204 = vmax.f32 %v1108, %v1156
      %v1205 = vmax.f32 %v1109, %v1157
      %v1206 = vmax.f32 %v1110, %v1158
      %v1207 = vmax.f32 %v1111, %v1159
      %v1208 = vmax.f32 %v1112, %v1160
      %v1209 = vmax.f32 %v1113, %v1161
      %v1210 = vmax.f32 %v1114, %v1162
      %v1211 = vmax.f32 %v1115, %v1163
      %v1212 = vmax.f32 %v1116, %v1164
      %v1213 = vmax.f32 %v1117, %v1165
      %v1214 = vmax.f32 %v1118, %v1166
      %v1215 = vmax.f32 %v1119, %v1167
      %v1216 = vld [vmem:[%s573] sm:$0xff]
      %v1217 = vld [vmem:[%s573 + $0x8] sm:$0xff]
      %v1218 = vld [vmem:[%s573 + $0x10] sm:$0x3]
      %v1219 = vld [vmem:[%s573 + $0x18] sm:$0xff]
      %v1220 = vld [vmem:[%s573 + $0x20] sm:$0xff]
      %v1221 = vld [vmem:[%s573 + $0x28] sm:$0x3]
      %v1222 = vld [vmem:[%s573 + $0x30] sm:$0xff]
      %v1223 = vld [vmem:[%s573 + $0x38] sm:$0xff]
      %v1224 = vld [vmem:[%s573 + $0x40] sm:$0x3]
      %v1225 = vld [vmem:[%s573 + $0x48] sm:$0xff]
      %v1226 = vld [vmem:[%s573 + $0x50] sm:$0xff]
      %v1227 = vld [vmem:[%s573 + $0x58] sm:$0x3]
      %v1228 = vld [vmem:[%s573 + $0x60] sm:$0xff]
      %v1229 = vld [vmem:[%s573 + $0x68] sm:$0xff]
      %v1230 = vld [vmem:[%s573 + $0x70] sm:$0x3]
      %v1231 = vld [vmem:[%s573 + $0x78] sm:$0xff]
      %v1232 = vld [vmem:[%s573 + $0x80] sm:$0xff]
      %v1233 = vld [vmem:[%s573 + $0x88] sm:$0x3]
      %v1234 = vld [vmem:[%s573 + $0x90] sm:$0xff]
      %v1235 = vld [vmem:[%s573 + $0x98] sm:$0xff]
      %v1236 = vld [vmem:[%s573 + $0xa0] sm:$0x3]
      %v1237 = vld [vmem:[%s573 + $0xa8] sm:$0xff]
      %v1238 = vld [vmem:[%s573 + $0xb0] sm:$0xff]
      %v1239 = vld [vmem:[%s573 + $0xb8] sm:$0x3]
      %v1240 = vld [vmem:[%s573 + $0xc0] sm:$0xff]
      %v1241 = vld [vmem:[%s573 + $0xc8] sm:$0xff]
      %v1242 = vld [vmem:[%s573 + $0xd0] sm:$0x3]
      %v1243 = vld [vmem:[%s573 + $0xd8] sm:$0xff]
      %v1244 = vld [vmem:[%s573 + $0xe0] sm:$0xff]
      %v1245 = vld [vmem:[%s573 + $0xe8] sm:$0x3]
      %v1246 = vld [vmem:[%s573 + $0xf0] sm:$0xff]
      %v1247 = vld [vmem:[%s573 + $0xf8] sm:$0xff]
      %v1248 = vld [vmem:[%s573 + $0x100] sm:$0x3]
      %v1249 = vld [vmem:[%s573 + $0x108] sm:$0xff]
      %v1250 = vld [vmem:[%s573 + $0x110] sm:$0xff]
      %v1251 = vld [vmem:[%s573 + $0x118] sm:$0x3]
      %v1252 = vld [vmem:[%s573 + $0x120] sm:$0xff]
      %v1253 = vld [vmem:[%s573 + $0x128] sm:$0xff]
      %v1254 = vld [vmem:[%s573 + $0x130] sm:$0x3]
      %v1255 = vld [vmem:[%s573 + $0x138] sm:$0xff]
      %v1256 = vld [vmem:[%s573 + $0x140] sm:$0xff]
      %v1257 = vld [vmem:[%s573 + $0x148] sm:$0x3]
      %v1258 = vld [vmem:[%s573 + $0x150] sm:$0xff]
      %v1259 = vld [vmem:[%s573 + $0x158] sm:$0xff]
      %v1260 = vld [vmem:[%s573 + $0x160] sm:$0x3]
      %v1261 = vld [vmem:[%s573 + $0x168] sm:$0xff]
      %v1262 = vld [vmem:[%s573 + $0x170] sm:$0xff]
      %v1263 = vld [vmem:[%s573 + $0x178] sm:$0x3]
      %v1264 = vmax.f32 %v1168, %v1216
      %v1265 = vmax.f32 %v1169, %v1217
      %v1266 = vmax.f32 %v1170, %v1218
      %v1267 = vmax.f32 %v1171, %v1219
      %v1268 = vmax.f32 %v1172, %v1220
      %v1269 = vmax.f32 %v1173, %v1221
      %v1270 = vmax.f32 %v1174, %v1222
      %v1271 = vmax.f32 %v1175, %v1223
      %v1272 = vmax.f32 %v1176, %v1224
      %v1273 = vmax.f32 %v1177, %v1225
      %v1274 = vmax.f32 %v1178, %v1226
      %v1275 = vmax.f32 %v1179, %v1227
      %v1276 = vmax.f32 %v1180, %v1228
      %v1277 = vmax.f32 %v1181, %v1229
      %v1278 = vmax.f32 %v1182, %v1230
      %v1279 = vmax.f32 %v1183, %v1231
      %v1280 = vmax.f32 %v1184, %v1232
      %v1281 = vmax.f32 %v1185, %v1233
      %v1282 = vmax.f32 %v1186, %v1234
      %v1283 = vmax.f32 %v1187, %v1235
      %v1284 = vmax.f32 %v1188, %v1236
      %v1285 = vmax.f32 %v1189, %v1237
      %v1286 = vmax.f32 %v1190, %v1238
      %v1287 = vmax.f32 %v1191, %v1239
      %v1288 = vmax.f32 %v1192, %v1240
      %v1289 = vmax.f32 %v1193, %v1241
      %v1290 = vmax.f32 %v1194, %v1242
      %v1291 = vmax.f32 %v1195, %v1243
      %v1292 = vmax.f32 %v1196, %v1244
      %v1293 = vmax.f32 %v1197, %v1245
      %v1294 = vmax.f32 %v1198, %v1246
      %v1295 = vmax.f32 %v1199, %v1247
      %v1296 = vmax.f32 %v1200, %v1248
      %v1297 = vmax.f32 %v1201, %v1249
      %v1298 = vmax.f32 %v1202, %v1250
      %v1299 = vmax.f32 %v1203, %v1251
      %v1300 = vmax.f32 %v1204, %v1252
      %v1301 = vmax.f32 %v1205, %v1253
      %v1302 = vmax.f32 %v1206, %v1254
      %v1303 = vmax.f32 %v1207, %v1255
      %v1304 = vmax.f32 %v1208, %v1256
      %v1305 = vmax.f32 %v1209, %v1257
      %v1306 = vmax.f32 %v1210, %v1258
      %v1307 = vmax.f32 %v1211, %v1259
      %v1308 = vmax.f32 %v1212, %v1260
      %v1309 = vmax.f32 %v1213, %v1261
      %v1310 = vmax.f32 %v1214, %v1262
      %v1311 = vmax.f32 %v1215, %v1263
      %v1360 = vrot.slane %v1264, 1
      %v1361 = vrot.slane %v1265, 1
      %v1362 = vsel %vm718, %v1360, %v1361
      %v1363 = vrot.slane %v1266, 1
      %v1364 = vsel %vm718, %v1361, %v1363
      %v1365 = vrot.slane %v1267, 1
      %v1366 = vrot.slane %v1268, 1
      %v1367 = vsel %vm718, %v1365, %v1366
      %v1368 = vrot.slane %v1269, 1
      %v1369 = vsel %vm718, %v1366, %v1368
      %v1370 = vrot.slane %v1270, 1
      %v1371 = vrot.slane %v1271, 1
      %v1372 = vsel %vm718, %v1370, %v1371
      %v1373 = vrot.slane %v1272, 1
      %v1374 = vsel %vm718, %v1371, %v1373
      %v1375 = vrot.slane %v1273, 1
      %v1376 = vrot.slane %v1274, 1
      %v1377 = vsel %vm718, %v1375, %v1376
      %v1378 = vrot.slane %v1275, 1
      %v1379 = vsel %vm718, %v1376, %v1378
      %v1380 = vrot.slane %v1276, 1
      %v1381 = vrot.slane %v1277, 1
      %v1382 = vsel %vm718, %v1380, %v1381
      %v1383 = vrot.slane %v1278, 1
      %v1384 = vsel %vm718, %v1381, %v1383
      %v1385 = vrot.slane %v1279, 1
      %v1386 = vrot.slane %v1280, 1
      %v1387 = vsel %vm718, %v1385, %v1386
      %v1388 = vrot.slane %v1281, 1
      %v1389 = vsel %vm718, %v1386, %v1388
      %v1390 = vrot.slane %v1282, 1
      %v1391 = vrot.slane %v1283, 1
      %v1392 = vsel %vm718, %v1390, %v1391
      %v1393 = vrot.slane %v1284, 1
      %v1394 = vsel %vm718, %v1391, %v1393
      %v1395 = vrot.slane %v1285, 1
      %v1396 = vrot.slane %v1286, 1
      %v1397 = vsel %vm718, %v1395, %v1396
      %v1398 = vrot.slane %v1287, 1
      %v1399 = vsel %vm718, %v1396, %v1398
      %v1400 = vrot.slane %v1288, 1
      %v1401 = vrot.slane %v1289, 1
      %v1402 = vsel %vm718, %v1400, %v1401
      %v1403 = vrot.slane %v1290, 1
      %v1404 = vsel %vm718, %v1401, %v1403
      %v1405 = vrot.slane %v1291, 1
      %v1406 = vrot.slane %v1292, 1
      %v1407 = vsel %vm718, %v1405, %v1406
      %v1408 = vrot.slane %v1293, 1
      %v1409 = vsel %vm718, %v1406, %v1408
      %v1410 = vrot.slane %v1294, 1
      %v1411 = vrot.slane %v1295, 1
      %v1412 = vsel %vm718, %v1410, %v1411
      %v1413 = vrot.slane %v1296, 1
      %v1414 = vsel %vm718, %v1411, %v1413
      %v1415 = vrot.slane %v1297, 1
      %v1416 = vrot.slane %v1298, 1
      %v1417 = vsel %vm718, %v1415, %v1416
      %v1418 = vrot.slane %v1299, 1
      %v1419 = vsel %vm718, %v1416, %v1418
      %v1420 = vrot.slane %v1300, 1
      %v1421 = vrot.slane %v1301, 1
      %v1422 = vsel %vm718, %v1420, %v1421
      %v1423 = vrot.slane %v1302, 1
      %v1424 = vsel %vm718, %v1421, %v1423
      %v1425 = vrot.slane %v1303, 1
      %v1426 = vrot.slane %v1304, 1
      %v1427 = vsel %vm718, %v1425, %v1426
      %v1428 = vrot.slane %v1305, 1
      %v1429 = vsel %vm718, %v1426, %v1428
      %v1430 = vrot.slane %v1306, 1
      %v1431 = vrot.slane %v1307, 1
      %v1432 = vsel %vm718, %v1430, %v1431
      %v1433 = vrot.slane %v1308, 1
      %v1434 = vsel %vm718, %v1431, %v1433
      %v1435 = vrot.slane %v1309, 1
      %v1436 = vrot.slane %v1310, 1
      %v1437 = vsel %vm718, %v1435, %v1436
      %v1438 = vrot.slane %v1311, 1
      %v1439 = vsel %vm718, %v1436, %v1438
      %v1472 = vmax.f32 %v1264, %v1362
      %v1473 = vmax.f32 %v1265, %v1364
      %v1474 = vmax.f32 %v1267, %v1367
      %v1475 = vmax.f32 %v1268, %v1369
      %v1476 = vmax.f32 %v1270, %v1372
      %v1477 = vmax.f32 %v1271, %v1374
      %v1478 = vmax.f32 %v1273, %v1377
      %v1479 = vmax.f32 %v1274, %v1379
      %v1480 = vmax.f32 %v1276, %v1382
      %v1481 = vmax.f32 %v1277, %v1384
      %v1482 = vmax.f32 %v1279, %v1387
      %v1483 = vmax.f32 %v1280, %v1389
      %v1484 = vmax.f32 %v1282, %v1392
      %v1485 = vmax.f32 %v1283, %v1394
      %v1486 = vmax.f32 %v1285, %v1397
      %v1487 = vmax.f32 %v1286, %v1399
      %v1488 = vmax.f32 %v1288, %v1402
      %v1489 = vmax.f32 %v1289, %v1404
      %v1490 = vmax.f32 %v1291, %v1407
      %v1491 = vmax.f32 %v1292, %v1409
      %v1492 = vmax.f32 %v1294, %v1412
      %v1493 = vmax.f32 %v1295, %v1414
      %v1494 = vmax.f32 %v1297, %v1417
      %v1495 = vmax.f32 %v1298, %v1419
      %v1496 = vmax.f32 %v1300, %v1422
      %v1497 = vmax.f32 %v1301, %v1424
      %v1498 = vmax.f32 %v1303, %v1427
      %v1499 = vmax.f32 %v1304, %v1429
      %v1500 = vmax.f32 %v1306, %v1432
      %v1501 = vmax.f32 %v1307, %v1434
      %v1502 = vmax.f32 %v1309, %v1437
      %v1503 = vmax.f32 %v1310, %v1439
      %v1504 = vrot.slane %v1264, 2
      %v1505 = vrot.slane %v1265, 2
      %v1506 = vsel %vm863, %v1504, %v1505
      %v1507 = vrot.slane %v1266, 2
      %v1508 = vsel %vm863, %v1505, %v1507
      %v1509 = vrot.slane %v1267, 2
      %v1510 = vrot.slane %v1268, 2
      %v1511 = vsel %vm863, %v1509, %v1510
      %v1512 = vrot.slane %v1269, 2
      %v1513 = vsel %vm863, %v1510, %v1512
      %v1514 = vrot.slane %v1270, 2
      %v1515 = vrot.slane %v1271, 2
      %v1516 = vsel %vm863, %v1514, %v1515
      %v1517 = vrot.slane %v1272, 2
      %v1518 = vsel %vm863, %v1515, %v1517
      %v1519 = vrot.slane %v1273, 2
      %v1520 = vrot.slane %v1274, 2
      %v1521 = vsel %vm863, %v1519, %v1520
      %v1522 = vrot.slane %v1275, 2
      %v1523 = vsel %vm863, %v1520, %v1522
      %v1524 = vrot.slane %v1276, 2
      %v1525 = vrot.slane %v1277, 2
      %v1526 = vsel %vm863, %v1524, %v1525
      %v1527 = vrot.slane %v1278, 2
      %v1528 = vsel %vm863, %v1525, %v1527
      %v1529 = vrot.slane %v1279, 2
      %v1530 = vrot.slane %v1280, 2
      %v1531 = vsel %vm863, %v1529, %v1530
      %v1532 = vrot.slane %v1281, 2
      %v1533 = vsel %vm863, %v1530, %v1532
      %v1534 = vrot.slane %v1282, 2
      %v1535 = vrot.slane %v1283, 2
      %v1536 = vsel %vm863, %v1534, %v1535
      %v1537 = vrot.slane %v1284, 2
      %v1538 = vsel %vm863, %v1535, %v1537
      %v1539 = vrot.slane %v1285, 2
      %v1540 = vrot.slane %v1286, 2
      %v1541 = vsel %vm863, %v1539, %v1540
      %v1542 = vrot.slane %v1287, 2
      %v1543 = vsel %vm863, %v1540, %v1542
      %v1544 = vrot.slane %v1288, 2
      %v1545 = vrot.slane %v1289, 2
      %v1546 = vsel %vm863, %v1544, %v1545
      %v1547 = vrot.slane %v1290, 2
      %v1548 = vsel %vm863, %v1545, %v1547
      %v1549 = vrot.slane %v1291, 2
      %v1550 = vrot.slane %v1292, 2
      %v1551 = vsel %vm863, %v1549, %v1550
      %v1552 = vrot.slane %v1293, 2
      %v1553 = vsel %vm863, %v1550, %v1552
      %v1554 = vrot.slane %v1294, 2
      %v1555 = vrot.slane %v1295, 2
      %v1556 = vsel %vm863, %v1554, %v1555
      %v1557 = vrot.slane %v1296, 2
      %v1558 = vsel %vm863, %v1555, %v1557
      %v1559 = vrot.slane %v1297, 2
      %v1560 = vrot.slane %v1298, 2
      %v1561 = vsel %vm863, %v1559, %v1560
      %v1562 = vrot.slane %v1299, 2
      %v1563 = vsel %vm863, %v1560, %v1562
      %v1564 = vrot.slane %v1300, 2
      %v1565 = vrot.slane %v1301, 2
      %v1566 = vsel %vm863, %v1564, %v1565
      %v1567 = vrot.slane %v1302, 2
      %v1568 = vsel %vm863, %v1565, %v1567
      %v1569 = vrot.slane %v1303, 2
      %v1570 = vrot.slane %v1304, 2
      %v1571 = vsel %vm863, %v1569, %v1570
      %v1572 = vrot.slane %v1305, 2
      %v1573 = vsel %vm863, %v1570, %v1572
      %v1574 = vrot.slane %v1306, 2
      %v1575 = vrot.slane %v1307, 2
      %v1576 = vsel %vm863, %v1574, %v1575
      %v1577 = vrot.slane %v1308, 2
      %v1578 = vsel %vm863, %v1575, %v1577
      %v1579 = vrot.slane %v1309, 2
      %v1580 = vrot.slane %v1310, 2
      %v1581 = vsel %vm863, %v1579, %v1580
      %v1582 = vrot.slane %v1311, 2
      %v1583 = vsel %vm863, %v1580, %v1582
      %v1616 = vmax.f32 %v1472, %v1506
      %v1617 = vmax.f32 %v1473, %v1508
      %v1618 = vmax.f32 %v1474, %v1511
      %v1619 = vmax.f32 %v1475, %v1513
      %v1620 = vmax.f32 %v1476, %v1516
      %v1621 = vmax.f32 %v1477, %v1518
      %v1622 = vmax.f32 %v1478, %v1521
      %v1623 = vmax.f32 %v1479, %v1523
      %v1624 = vmax.f32 %v1480, %v1526
      %v1625 = vmax.f32 %v1481, %v1528
      %v1626 = vmax.f32 %v1482, %v1531
      %v1627 = vmax.f32 %v1483, %v1533
      %v1628 = vmax.f32 %v1484, %v1536
      %v1629 = vmax.f32 %v1485, %v1538
      %v1630 = vmax.f32 %v1486, %v1541
      %v1631 = vmax.f32 %v1487, %v1543
      %v1632 = vmax.f32 %v1488, %v1546
      %v1633 = vmax.f32 %v1489, %v1548
      %v1634 = vmax.f32 %v1490, %v1551
      %v1635 = vmax.f32 %v1491, %v1553
      %v1636 = vmax.f32 %v1492, %v1556
      %v1637 = vmax.f32 %v1493, %v1558
      %v1638 = vmax.f32 %v1494, %v1561
      %v1639 = vmax.f32 %v1495, %v1563
      %v1640 = vmax.f32 %v1496, %v1566
      %v1641 = vmax.f32 %v1497, %v1568
      %v1642 = vmax.f32 %v1498, %v1571
      %v1643 = vmax.f32 %v1499, %v1573
      %v1644 = vmax.f32 %v1500, %v1576
      %v1645 = vmax.f32 %v1501, %v1578
      %v1646 = vmax.f32 %v1502, %v1581
      %v1647 = vmax.f32 %v1503, %v1583
      %1648 = vst.msk [vmem:[%s281] sm:$0xff] %vm322, %v1616
      %1649 = vst.msk [vmem:[%s281 + $0x8] sm:$0xff] %vm322, %v1617
      %1650 = vst.msk [vmem:[%s281 + $0x10] sm:$0xff] %vm322, %v1618
      %1651 = vst.msk [vmem:[%s281 + $0x18] sm:$0xff] %vm322, %v1619
      %1652 = vst.msk [vmem:[%s281 + $0x20] sm:$0xff] %vm322, %v1620
      %1653 = vst.msk [vmem:[%s281 + $0x28] sm:$0xff] %vm322, %v1621
      %1654 = vst.msk [vmem:[%s281 + $0x30] sm:$0xff] %vm322, %v1622
      %1655 = vst.msk [vmem:[%s281 + $0x38] sm:$0xff] %vm322, %v1623
      %1656 = vst.msk [vmem:[%s281 + $0x40] sm:$0xff] %vm322, %v1624
      %1657 = vst.msk [vmem:[%s281 + $0x48] sm:$0xff] %vm322, %v1625
      %1658 = vst.msk [vmem:[%s281 + $0x50] sm:$0xff] %vm322, %v1626
      %1659 = vst.msk [vmem:[%s281 + $0x58] sm:$0xff] %vm322, %v1627
      %1660 = vst.msk [vmem:[%s281 + $0x60] sm:$0xff] %vm322, %v1628
      %1661 = vst.msk [vmem:[%s281 + $0x68] sm:$0xff] %vm322, %v1629
      %1662 = vst.msk [vmem:[%s281 + $0x70] sm:$0xff] %vm322, %v1630
      %1663 = vst.msk [vmem:[%s281 + $0x78] sm:$0xff] %vm322, %v1631
      %1664 = vst.msk [vmem:[%s281 + $0x80] sm:$0xff] %vm322, %v1632
      %1665 = vst.msk [vmem:[%s281 + $0x88] sm:$0xff] %vm322, %v1633
      %1666 = vst.msk [vmem:[%s281 + $0x90] sm:$0xff] %vm322, %v1634
      %1667 = vst.msk [vmem:[%s281 + $0x98] sm:$0xff] %vm322, %v1635
      %1668 = vst.msk [vmem:[%s281 + $0xa0] sm:$0xff] %vm322, %v1636
      %1669 = vst.msk [vmem:[%s281 + $0xa8] sm:$0xff] %vm322, %v1637
      %1670 = vst.msk [vmem:[%s281 + $0xb0] sm:$0xff] %vm322, %v1638
      %1671 = vst.msk [vmem:[%s281 + $0xb8] sm:$0xff] %vm322, %v1639
      %1672 = vst.msk [vmem:[%s281 + $0xc0] sm:$0xff] %vm322, %v1640
      %1673 = vst.msk [vmem:[%s281 + $0xc8] sm:$0xff] %vm322, %v1641
      %1674 = vst.msk [vmem:[%s281 + $0xd0] sm:$0xff] %vm322, %v1642
      %1675 = vst.msk [vmem:[%s281 + $0xd8] sm:$0xff] %vm322, %v1643
      %1676 = vst.msk [vmem:[%s281 + $0xe0] sm:$0xff] %vm322, %v1644
      %1677 = vst.msk [vmem:[%s281 + $0xe8] sm:$0xff] %vm322, %v1645
      %1678 = vst.msk [vmem:[%s281 + $0xf0] sm:$0xff] %vm322, %v1646
      %1679 = vst.msk [vmem:[%s281 + $0xf8] sm:$0xff] %vm322, %v1647
      %1680 = vst.msk [vmem:[%s363 + $0x1] sm:$0xff] %vm322, %v1616
      %1681 = vst.msk [vmem:[%s363 + $0x9] sm:$0xff] %vm322, %v1617
      %1682 = vst.msk [vmem:[%s363 + $0x19] sm:$0xff] %vm322, %v1618
      %1683 = vst.msk [vmem:[%s363 + $0x21] sm:$0xff] %vm322, %v1619
      %1684 = vst.msk [vmem:[%s363 + $0x31] sm:$0xff] %vm322, %v1620
      %1685 = vst.msk [vmem:[%s363 + $0x39] sm:$0xff] %vm322, %v1621
      %1686 = vst.msk [vmem:[%s363 + $0x49] sm:$0xff] %vm322, %v1622
      %1687 = vst.msk [vmem:[%s363 + $0x51] sm:$0xff] %vm322, %v1623
      %1688 = vst.msk [vmem:[%s363 + $0x61] sm:$0xff] %vm322, %v1624
      %1689 = vst.msk [vmem:[%s363 + $0x69] sm:$0xff] %vm322, %v1625
      %1690 = vst.msk [vmem:[%s363 + $0x79] sm:$0xff] %vm322, %v1626
      %1691 = vst.msk [vmem:[%s363 + $0x81] sm:$0xff] %vm322, %v1627
      %1692 = vst.msk [vmem:[%s363 + $0x91] sm:$0xff] %vm322, %v1628
      %1693 = vst.msk [vmem:[%s363 + $0x99] sm:$0xff] %vm322, %v1629
      %1694 = vst.msk [vmem:[%s363 + $0xa9] sm:$0xff] %vm322, %v1630
      %1695 = vst.msk [vmem:[%s363 + $0xb1] sm:$0xff] %vm322, %v1631
      %1696 = vst.msk [vmem:[%s363 + $0xc1] sm:$0xff] %vm322, %v1632
      %1697 = vst.msk [vmem:[%s363 + $0xc9] sm:$0xff] %vm322, %v1633
      %1698 = vst.msk [vmem:[%s363 + $0xd9] sm:$0xff] %vm322, %v1634
      %1699 = vst.msk [vmem:[%s363 + $0xe1] sm:$0xff] %vm322, %v1635
      %1700 = vst.msk [vmem:[%s363 + $0xf1] sm:$0xff] %vm322, %v1636
      %1701 = vst.msk [vmem:[%s363 + $0xf9] sm:$0xff] %vm322, %v1637
      %1702 = vst.msk [vmem:[%s363 + $0x109] sm:$0xff] %vm322, %v1638
      %1703 = vst.msk [vmem:[%s363 + $0x111] sm:$0xff] %vm322, %v1639
      %1704 = vst.msk [vmem:[%s363 + $0x121] sm:$0xff] %vm322, %v1640
      %1705 = vst.msk [vmem:[%s363 + $0x129] sm:$0xff] %vm322, %v1641
      %1706 = vst.msk [vmem:[%s363 + $0x139] sm:$0xff] %vm322, %v1642
      %1707 = vst.msk [vmem:[%s363 + $0x141] sm:$0xff] %vm322, %v1643
      %1708 = vst.msk [vmem:[%s363 + $0x151] sm:$0xff] %vm322, %v1644
      %1709 = vst.msk [vmem:[%s363 + $0x159] sm:$0xff] %vm322, %v1645
      %1710 = vst.msk [vmem:[%s363 + $0x169] sm:$0xff] %vm322, %v1646
      %1711 = vst.msk [vmem:[%s363 + $0x171] sm:$0xff] %vm322, %v1647
      %v1712 = vld [vmem:[#allocation2] sm:$0xff]
      %v1713 = vld [vmem:[#allocation2 + $0x8] sm:$0xff]
      %v1714 = vld [vmem:[#allocation2 + $0x10] sm:$0x3]
      %v1715 = vld [vmem:[#allocation2 + $0x18] sm:$0xff]
      %v1716 = vld [vmem:[#allocation2 + $0x20] sm:$0xff]
      %v1717 = vld [vmem:[#allocation2 + $0x28] sm:$0x3]
      %v1718 = vld [vmem:[#allocation2 + $0x30] sm:$0xff]
      %v1719 = vld [vmem:[#allocation2 + $0x38] sm:$0xff]
      %v1720 = vld [vmem:[#allocation2 + $0x40] sm:$0x3]
      %v1721 = vld [vmem:[#allocation2 + $0x48] sm:$0xff]
      %v1722 = vld [vmem:[#allocation2 + $0x50] sm:$0xff]
      %v1723 = vld [vmem:[#allocation2 + $0x58] sm:$0x3]
      %v1724 = vld [vmem:[#allocation2 + $0x60] sm:$0xff]
      %v1725 = vld [vmem:[#allocation2 + $0x68] sm:$0xff]
      %v1726 = vld [vmem:[#allocation2 + $0x70] sm:$0x3]
      %v1727 = vld [vmem:[#allocation2 + $0x78] sm:$0xff]
      %v1728 = vld [vmem:[#allocation2 + $0x80] sm:$0xff]
      %v1729 = vld [vmem:[#allocation2 + $0x88] sm:$0x3]
      %v1730 = vld [vmem:[#allocation2 + $0x90] sm:$0xff]
      %v1731 = vld [vmem:[#allocation2 + $0x98] sm:$0xff]
      %v1732 = vld [vmem:[#allocation2 + $0xa0] sm:$0x3]
      %v1733 = vld [vmem:[#allocation2 + $0xa8] sm:$0xff]
      %v1734 = vld [vmem:[#allocation2 + $0xb0] sm:$0xff]
      %v1735 = vld [vmem:[#allocation2 + $0xb8] sm:$0x3]
      %v1736 = vld [vmem:[#allocation2 + $0xc0] sm:$0xff]
      %v1737 = vld [vmem:[#allocation2 + $0xc8] sm:$0xff]
      %v1738 = vld [vmem:[#allocation2 + $0xd0] sm:$0x3]
      %v1739 = vld [vmem:[#allocation2 + $0xd8] sm:$0xff]
      %v1740 = vld [vmem:[#allocation2 + $0xe0] sm:$0xff]
      %v1741 = vld [vmem:[#allocation2 + $0xe8] sm:$0x3]
      %v1742 = vld [vmem:[#allocation2 + $0xf0] sm:$0xff]
      %v1743 = vld [vmem:[#allocation2 + $0xf8] sm:$0xff]
      %v1744 = vld [vmem:[#allocation2 + $0x100] sm:$0x3]
      %v1745 = vld [vmem:[#allocation2 + $0x108] sm:$0xff]
      %v1746 = vld [vmem:[#allocation2 + $0x110] sm:$0xff]
      %v1747 = vld [vmem:[#allocation2 + $0x118] sm:$0x3]
      %v1748 = vld [vmem:[#allocation2 + $0x120] sm:$0xff]
      %v1749 = vld [vmem:[#allocation2 + $0x128] sm:$0xff]
      %v1750 = vld [vmem:[#allocation2 + $0x130] sm:$0x3]
      %v1751 = vld [vmem:[#allocation2 + $0x138] sm:$0xff]
      %v1752 = vld [vmem:[#allocation2 + $0x140] sm:$0xff]
      %v1753 = vld [vmem:[#allocation2 + $0x148] sm:$0x3]
      %v1754 = vld [vmem:[#allocation2 + $0x150] sm:$0xff]
      %v1755 = vld [vmem:[#allocation2 + $0x158] sm:$0xff]
      %v1756 = vld [vmem:[#allocation2 + $0x160] sm:$0x3]
      %v1757 = vld [vmem:[#allocation2 + $0x168] sm:$0xff]
      %v1758 = vld [vmem:[#allocation2 + $0x170] sm:$0xff]
      %v1759 = vld [vmem:[#allocation2 + $0x178] sm:$0x3]
      %v1760 = vld [vmem:[%s363] sm:$0xff]
      %v1761 = vld [vmem:[%s363 + $0x8] sm:$0xff]
      %v1762 = vld [vmem:[%s363 + $0x10] sm:$0x3]
      %v1763 = vld [vmem:[%s363 + $0x18] sm:$0xff]
      %v1764 = vld [vmem:[%s363 + $0x20] sm:$0xff]
      %v1765 = vld [vmem:[%s363 + $0x28] sm:$0x3]
      %v1766 = vld [vmem:[%s363 + $0x30] sm:$0xff]
      %v1767 = vld [vmem:[%s363 + $0x38] sm:$0xff]
      %v1768 = vld [vmem:[%s363 + $0x40] sm:$0x3]
      %v1769 = vld [vmem:[%s363 + $0x48] sm:$0xff]
      %v1770 = vld [vmem:[%s363 + $0x50] sm:$0xff]
      %v1771 = vld [vmem:[%s363 + $0x58] sm:$0x3]
      %v1772 = vld [vmem:[%s363 + $0x60] sm:$0xff]
      %v1773 = vld [vmem:[%s363 + $0x68] sm:$0xff]
      %v1774 = vld [vmem:[%s363 + $0x70] sm:$0x3]
      %v1775 = vld [vmem:[%s363 + $0x78] sm:$0xff]
      %v1776 = vld [vmem:[%s363 + $0x80] sm:$0xff]
      %v1777 = vld [vmem:[%s363 + $0x88] sm:$0x3]
      %v1778 = vld [vmem:[%s363 + $0x90] sm:$0xff]
      %v1779 = vld [vmem:[%s363 + $0x98] sm:$0xff]
      %v1780 = vld [vmem:[%s363 + $0xa0] sm:$0x3]
      %v1781 = vld [vmem:[%s363 + $0xa8] sm:$0xff]
      %v1782 = vld [vmem:[%s363 + $0xb0] sm:$0xff]
      %v1783 = vld [vmem:[%s363 + $0xb8] sm:$0x3]
      %v1784 = vld [vmem:[%s363 + $0xc0] sm:$0xff]
      %v1785 = vld [vmem:[%s363 + $0xc8] sm:$0xff]
      %v1786 = vld [vmem:[%s363 + $0xd0] sm:$0x3]
      %v1787 = vld [vmem:[%s363 + $0xd8] sm:$0xff]
      %v1788 = vld [vmem:[%s363 + $0xe0] sm:$0xff]
      %v1789 = vld [vmem:[%s363 + $0xe8] sm:$0x3]
      %v1790 = vld [vmem:[%s363 + $0xf0] sm:$0xff]
      %v1791 = vld [vmem:[%s363 + $0xf8] sm:$0xff]
      %v1792 = vld [vmem:[%s363 + $0x100] sm:$0x3]
      %v1793 = vld [vmem:[%s363 + $0x108] sm:$0xff]
      %v1794 = vld [vmem:[%s363 + $0x110] sm:$0xff]
      %v1795 = vld [vmem:[%s363 + $0x118] sm:$0x3]
      %v1796 = vld [vmem:[%s363 + $0x120] sm:$0xff]
      %v1797 = vld [vmem:[%s363 + $0x128] sm:$0xff]
      %v1798 = vld [vmem:[%s363 + $0x130] sm:$0x3]
      %v1799 = vld [vmem:[%s363 + $0x138] sm:$0xff]
      %v1800 = vld [vmem:[%s363 + $0x140] sm:$0xff]
      %v1801 = vld [vmem:[%s363 + $0x148] sm:$0x3]
      %v1802 = vld [vmem:[%s363 + $0x150] sm:$0xff]
      %v1803 = vld [vmem:[%s363 + $0x158] sm:$0xff]
      %v1804 = vld [vmem:[%s363 + $0x160] sm:$0x3]
      %v1805 = vld [vmem:[%s363 + $0x168] sm:$0xff]
      %v1806 = vld [vmem:[%s363 + $0x170] sm:$0xff]
      %v1807 = vld [vmem:[%s363 + $0x178] sm:$0x3]
      %v1808 = vmax.f32 %v1712, %v1760
      %v1809 = vmax.f32 %v1713, %v1761
      %v1810 = vmax.f32 %v1714, %v1762
      %v1811 = vmax.f32 %v1715, %v1763
      %v1812 = vmax.f32 %v1716, %v1764
      %v1813 = vmax.f32 %v1717, %v1765
      %v1814 = vmax.f32 %v1718, %v1766
      %v1815 = vmax.f32 %v1719, %v1767
      %v1816 = vmax.f32 %v1720, %v1768
      %v1817 = vmax.f32 %v1721, %v1769
      %v1818 = vmax.f32 %v1722, %v1770
      %v1819 = vmax.f32 %v1723, %v1771
      %v1820 = vmax.f32 %v1724, %v1772
      %v1821 = vmax.f32 %v1725, %v1773
      %v1822 = vmax.f32 %v1726, %v1774
      %v1823 = vmax.f32 %v1727, %v1775
      %v1824 = vmax.f32 %v1728, %v1776
      %v1825 = vmax.f32 %v1729, %v1777
      %v1826 = vmax.f32 %v1730, %v1778
      %v1827 = vmax.f32 %v1731, %v1779
      %v1828 = vmax.f32 %v1732, %v1780
      %v1829 = vmax.f32 %v1733, %v1781
      %v1830 = vmax.f32 %v1734, %v1782
      %v1831 = vmax.f32 %v1735, %v1783
      %v1832 = vmax.f32 %v1736, %v1784
      %v1833 = vmax.f32 %v1737, %v1785
      %v1834 = vmax.f32 %v1738, %v1786
      %v1835 = vmax.f32 %v1739, %v1787
      %v1836 = vmax.f32 %v1740, %v1788
      %v1837 = vmax.f32 %v1741, %v1789
      %v1838 = vmax.f32 %v1742, %v1790
      %v1839 = vmax.f32 %v1743, %v1791
      %v1840 = vmax.f32 %v1744, %v1792
      %v1841 = vmax.f32 %v1745, %v1793
      %v1842 = vmax.f32 %v1746, %v1794
      %v1843 = vmax.f32 %v1747, %v1795
      %v1844 = vmax.f32 %v1748, %v1796
      %v1845 = vmax.f32 %v1749, %v1797
      %v1846 = vmax.f32 %v1750, %v1798
      %v1847 = vmax.f32 %v1751, %v1799
      %v1848 = vmax.f32 %v1752, %v1800
      %v1849 = vmax.f32 %v1753, %v1801
      %v1850 = vmax.f32 %v1754, %v1802
      %v1851 = vmax.f32 %v1755, %v1803
      %v1852 = vmax.f32 %v1756, %v1804
      %v1853 = vmax.f32 %v1757, %v1805
      %v1854 = vmax.f32 %v1758, %v1806
      %v1855 = vmax.f32 %v1759, %v1807
      %v1856 = vld [vmem:[%s573] sm:$0xff]
      %v1857 = vld [vmem:[%s573 + $0x8] sm:$0xff]
      %v1858 = vld [vmem:[%s573 + $0x10] sm:$0x3]
      %v1859 = vld [vmem:[%s573 + $0x18] sm:$0xff]
      %v1860 = vld [vmem:[%s573 + $0x20] sm:$0xff]
      %v1861 = vld [vmem:[%s573 + $0x28] sm:$0x3]
      %v1862 = vld [vmem:[%s573 + $0x30] sm:$0xff]
      %v1863 = vld [vmem:[%s573 + $0x38] sm:$0xff]
      %v1864 = vld [vmem:[%s573 + $0x40] sm:$0x3]
      %v1865 = vld [vmem:[%s573 + $0x48] sm:$0xff]
      %v1866 = vld [vmem:[%s573 + $0x50] sm:$0xff]
      %v1867 = vld [vmem:[%s573 + $0x58] sm:$0x3]
      %v1868 = vld [vmem:[%s573 + $0x60] sm:$0xff]
      %v1869 = vld [vmem:[%s573 + $0x68] sm:$0xff]
      %v1870 = vld [vmem:[%s573 + $0x70] sm:$0x3]
      %v1871 = vld [vmem:[%s573 + $0x78] sm:$0xff]
      %v1872 = vld [vmem:[%s573 + $0x80] sm:$0xff]
      %v1873 = vld [vmem:[%s573 + $0x88] sm:$0x3]
      %v1874 = vld [vmem:[%s573 + $0x90] sm:$0xff]
      %v1875 = vld [vmem:[%s573 + $0x98] sm:$0xff]
      %v1876 = vld [vmem:[%s573 + $0xa0] sm:$0x3]
      %v1877 = vld [vmem:[%s573 + $0xa8] sm:$0xff]
      %v1878 = vld [vmem:[%s573 + $0xb0] sm:$0xff]
      %v1879 = vld [vmem:[%s573 + $0xb8] sm:$0x3]
      %v1880 = vld [vmem:[%s573 + $0xc0] sm:$0xff]
      %v1881 = vld [vmem:[%s573 + $0xc8] sm:$0xff]
      %v1882 = vld [vmem:[%s573 + $0xd0] sm:$0x3]
      %v1883 = vld [vmem:[%s573 + $0xd8] sm:$0xff]
      %v1884 = vld [vmem:[%s573 + $0xe0] sm:$0xff]
      %v1885 = vld [vmem:[%s573 + $0xe8] sm:$0x3]
      %v1886 = vld [vmem:[%s573 + $0xf0] sm:$0xff]
      %v1887 = vld [vmem:[%s573 + $0xf8] sm:$0xff]
      %v1888 = vld [vmem:[%s573 + $0x100] sm:$0x3]
      %v1889 = vld [vmem:[%s573 + $0x108] sm:$0xff]
      %v1890 = vld [vmem:[%s573 + $0x110] sm:$0xff]
      %v1891 = vld [vmem:[%s573 + $0x118] sm:$0x3]
      %v1892 = vld [vmem:[%s573 + $0x120] sm:$0xff]
      %v1893 = vld [vmem:[%s573 + $0x128] sm:$0xff]
      %v1894 = vld [vmem:[%s573 + $0x130] sm:$0x3]
      %v1895 = vld [vmem:[%s573 + $0x138] sm:$0xff]
      %v1896 = vld [vmem:[%s573 + $0x140] sm:$0xff]
      %v1897 = vld [vmem:[%s573 + $0x148] sm:$0x3]
      %v1898 = vld [vmem:[%s573 + $0x150] sm:$0xff]
      %v1899 = vld [vmem:[%s573 + $0x158] sm:$0xff]
      %v1900 = vld [vmem:[%s573 + $0x160] sm:$0x3]
      %v1901 = vld [vmem:[%s573 + $0x168] sm:$0xff]
      %v1902 = vld [vmem:[%s573 + $0x170] sm:$0xff]
      %v1903 = vld [vmem:[%s573 + $0x178] sm:$0x3]
      %v1904 = vmax.f32 %v1808, %v1856
      %v1905 = vmax.f32 %v1809, %v1857
      %v1906 = vmax.f32 %v1810, %v1858
      %v1907 = vmax.f32 %v1811, %v1859
      %v1908 = vmax.f32 %v1812, %v1860
      %v1909 = vmax.f32 %v1813, %v1861
      %v1910 = vmax.f32 %v1814, %v1862
      %v1911 = vmax.f32 %v1815, %v1863
      %v1912 = vmax.f32 %v1816, %v1864
      %v1913 = vmax.f32 %v1817, %v1865
      %v1914 = vmax.f32 %v1818, %v1866
      %v1915 = vmax.f32 %v1819, %v1867
      %v1916 = vmax.f32 %v1820, %v1868
      %v1917 = vmax.f32 %v1821, %v1869
      %v1918 = vmax.f32 %v1822, %v1870
      %v1919 = vmax.f32 %v1823, %v1871
      %v1920 = vmax.f32 %v1824, %v1872
      %v1921 = vmax.f32 %v1825, %v1873
      %v1922 = vmax.f32 %v1826, %v1874
      %v1923 = vmax.f32 %v1827, %v1875
      %v1924 = vmax.f32 %v1828, %v1876
      %v1925 = vmax.f32 %v1829, %v1877
      %v1926 = vmax.f32 %v1830, %v1878
      %v1927 = vmax.f32 %v1831, %v1879
      %v1928 = vmax.f32 %v1832, %v1880
      %v1929 = vmax.f32 %v1833, %v1881
      %v1930 = vmax.f32 %v1834, %v1882
      %v1931 = vmax.f32 %v1835, %v1883
      %v1932 = vmax.f32 %v1836, %v1884
      %v1933 = vmax.f32 %v1837, %v1885
      %v1934 = vmax.f32 %v1838, %v1886
      %v1935 = vmax.f32 %v1839, %v1887
      %v1936 = vmax.f32 %v1840, %v1888
      %v1937 = vmax.f32 %v1841, %v1889
      %v1938 = vmax.f32 %v1842, %v1890
      %v1939 = vmax.f32 %v1843, %v1891
      %v1940 = vmax.f32 %v1844, %v1892
      %v1941 = vmax.f32 %v1845, %v1893
      %v1942 = vmax.f32 %v1846, %v1894
      %v1943 = vmax.f32 %v1847, %v1895
      %v1944 = vmax.f32 %v1848, %v1896
      %v1945 = vmax.f32 %v1849, %v1897
      %v1946 = vmax.f32 %v1850, %v1898
      %v1947 = vmax.f32 %v1851, %v1899
      %v1948 = vmax.f32 %v1852, %v1900
      %v1949 = vmax.f32 %v1853, %v1901
      %v1950 = vmax.f32 %v1854, %v1902
      %v1951 = vmax.f32 %v1855, %v1903
      %v2000 = vrot.slane %v1904, 1
      %v2001 = vrot.slane %v1905, 1
      %v2002 = vsel %vm718, %v2000, %v2001
      %v2003 = vrot.slane %v1906, 1
      %v2004 = vsel %vm718, %v2001, %v2003
      %v2005 = vrot.slane %v1907, 1
      %v2006 = vrot.slane %v1908, 1
      %v2007 = vsel %vm718, %v2005, %v2006
      %v2008 = vrot.slane %v1909, 1
      %v2009 = vsel %vm718, %v2006, %v2008
      %v2010 = vrot.slane %v1910, 1
      %v2011 = vrot.slane %v1911, 1
      %v2012 = vsel %vm718, %v2010, %v2011
      %v2013 = vrot.slane %v1912, 1
      %v2014 = vsel %vm718, %v2011, %v2013
      %v2015 = vrot.slane %v1913, 1
      %v2016 = vrot.slane %v1914, 1
      %v2017 = vsel %vm718, %v2015, %v2016
      %v2018 = vrot.slane %v1915, 1
      %v2019 = vsel %vm718, %v2016, %v2018
      %v2020 = vrot.slane %v1916, 1
      %v2021 = vrot.slane %v1917, 1
      %v2022 = vsel %vm718, %v2020, %v2021
      %v2023 = vrot.slane %v1918, 1
      %v2024 = vsel %vm718, %v2021, %v2023
      %v2025 = vrot.slane %v1919, 1
      %v2026 = vrot.slane %v1920, 1
      %v2027 = vsel %vm718, %v2025, %v2026
      %v2028 = vrot.slane %v1921, 1
      %v2029 = vsel %vm718, %v2026, %v2028
      %v2030 = vrot.slane %v1922, 1
      %v2031 = vrot.slane %v1923, 1
      %v2032 = vsel %vm718, %v2030, %v2031
      %v2033 = vrot.slane %v1924, 1
      %v2034 = vsel %vm718, %v2031, %v2033
      %v2035 = vrot.slane %v1925, 1
      %v2036 = vrot.slane %v1926, 1
      %v2037 = vsel %vm718, %v2035, %v2036
      %v2038 = vrot.slane %v1927, 1
      %v2039 = vsel %vm718, %v2036, %v2038
      %v2040 = vrot.slane %v1928, 1
      %v2041 = vrot.slane %v1929, 1
      %v2042 = vsel %vm718, %v2040, %v2041
      %v2043 = vrot.slane %v1930, 1
      %v2044 = vsel %vm718, %v2041, %v2043
      %v2045 = vrot.slane %v1931, 1
      %v2046 = vrot.slane %v1932, 1
      %v2047 = vsel %vm718, %v2045, %v2046
      %v2048 = vrot.slane %v1933, 1
      %v2049 = vsel %vm718, %v2046, %v2048
      %v2050 = vrot.slane %v1934, 1
      %v2051 = vrot.slane %v1935, 1
      %v2052 = vsel %vm718, %v2050, %v2051
      %v2053 = vrot.slane %v1936, 1
      %v2054 = vsel %vm718, %v2051, %v2053
      %v2055 = vrot.slane %v1937, 1
      %v2056 = vrot.slane %v1938, 1
      %v2057 = vsel %vm718, %v2055, %v2056
      %v2058 = vrot.slane %v1939, 1
      %v2059 = vsel %vm718, %v2056, %v2058
      %v2060 = vrot.slane %v1940, 1
      %v2061 = vrot.slane %v1941, 1
      %v2062 = vsel %vm718, %v2060, %v2061
      %v2063 = vrot.slane %v1942, 1
      %v2064 = vsel %vm718, %v2061, %v2063
      %v2065 = vrot.slane %v1943, 1
      %v2066 = vrot.slane %v1944, 1
      %v2067 = vsel %vm718, %v2065, %v2066
      %v2068 = vrot.slane %v1945, 1
      %v2069 = vsel %vm718, %v2066, %v2068
      %v2070 = vrot.slane %v1946, 1
      %v2071 = vrot.slane %v1947, 1
      %v2072 = vsel %vm718, %v2070, %v2071
      %v2073 = vrot.slane %v1948, 1
      %v2074 = vsel %vm718, %v2071, %v2073
      %v2075 = vrot.slane %v1949, 1
      %v2076 = vrot.slane %v1950, 1
      %v2077 = vsel %vm718, %v2075, %v2076
      %v2078 = vrot.slane %v1951, 1
      %v2079 = vsel %vm718, %v2076, %v2078
      %v2112 = vmax.f32 %v1904, %v2002
      %v2113 = vmax.f32 %v1905, %v2004
      %v2114 = vmax.f32 %v1907, %v2007
      %v2115 = vmax.f32 %v1908, %v2009
      %v2116 = vmax.f32 %v1910, %v2012
      %v2117 = vmax.f32 %v1911, %v2014
      %v2118 = vmax.f32 %v1913, %v2017
      %v2119 = vmax.f32 %v1914, %v2019
      %v2120 = vmax.f32 %v1916, %v2022
      %v2121 = vmax.f32 %v1917, %v2024
      %v2122 = vmax.f32 %v1919, %v2027
      %v2123 = vmax.f32 %v1920, %v2029
      %v2124 = vmax.f32 %v1922, %v2032
      %v2125 = vmax.f32 %v1923, %v2034
      %v2126 = vmax.f32 %v1925, %v2037
      %v2127 = vmax.f32 %v1926, %v2039
      %v2128 = vmax.f32 %v1928, %v2042
      %v2129 = vmax.f32 %v1929, %v2044
      %v2130 = vmax.f32 %v1931, %v2047
      %v2131 = vmax.f32 %v1932, %v2049
      %v2132 = vmax.f32 %v1934, %v2052
      %v2133 = vmax.f32 %v1935, %v2054
      %v2134 = vmax.f32 %v1937, %v2057
      %v2135 = vmax.f32 %v1938, %v2059
      %v2136 = vmax.f32 %v1940, %v2062
      %v2137 = vmax.f32 %v1941, %v2064
      %v2138 = vmax.f32 %v1943, %v2067
      %v2139 = vmax.f32 %v1944, %v2069
      %v2140 = vmax.f32 %v1946, %v2072
      %v2141 = vmax.f32 %v1947, %v2074
      %v2142 = vmax.f32 %v1949, %v2077
      %v2143 = vmax.f32 %v1950, %v2079
      %v2144 = vrot.slane %v1904, 2
      %v2145 = vrot.slane %v1905, 2
      %v2146 = vsel %vm863, %v2144, %v2145
      %v2147 = vrot.slane %v1906, 2
      %v2148 = vsel %vm863, %v2145, %v2147
      %v2149 = vrot.slane %v1907, 2
      %v2150 = vrot.slane %v1908, 2
      %v2151 = vsel %vm863, %v2149, %v2150
      %v2152 = vrot.slane %v1909, 2
      %v2153 = vsel %vm863, %v2150, %v2152
      %v2154 = vrot.slane %v1910, 2
      %v2155 = vrot.slane %v1911, 2
      %v2156 = vsel %vm863, %v2154, %v2155
      %v2157 = vrot.slane %v1912, 2
      %v2158 = vsel %vm863, %v2155, %v2157
      %v2159 = vrot.slane %v1913, 2
      %v2160 = vrot.slane %v1914, 2
      %v2161 = vsel %vm863, %v2159, %v2160
      %v2162 = vrot.slane %v1915, 2
      %v2163 = vsel %vm863, %v2160, %v2162
      %v2164 = vrot.slane %v1916, 2
      %v2165 = vrot.slane %v1917, 2
      %v2166 = vsel %vm863, %v2164, %v2165
      %v2167 = vrot.slane %v1918, 2
      %v2168 = vsel %vm863, %v2165, %v2167
      %v2169 = vrot.slane %v1919, 2
      %v2170 = vrot.slane %v1920, 2
      %v2171 = vsel %vm863, %v2169, %v2170
      %v2172 = vrot.slane %v1921, 2
      %v2173 = vsel %vm863, %v2170, %v2172
      %v2174 = vrot.slane %v1922, 2
      %v2175 = vrot.slane %v1923, 2
      %v2176 = vsel %vm863, %v2174, %v2175
      %v2177 = vrot.slane %v1924, 2
      %v2178 = vsel %vm863, %v2175, %v2177
      %v2179 = vrot.slane %v1925, 2
      %v2180 = vrot.slane %v1926, 2
      %v2181 = vsel %vm863, %v2179, %v2180
      %v2182 = vrot.slane %v1927, 2
      %v2183 = vsel %vm863, %v2180, %v2182
      %v2184 = vrot.slane %v1928, 2
      %v2185 = vrot.slane %v1929, 2
      %v2186 = vsel %vm863, %v2184, %v2185
      %v2187 = vrot.slane %v1930, 2
      %v2188 = vsel %vm863, %v2185, %v2187
      %v2189 = vrot.slane %v1931, 2
      %v2190 = vrot.slane %v1932, 2
      %v2191 = vsel %vm863, %v2189, %v2190
      %v2192 = vrot.slane %v1933, 2
      %v2193 = vsel %vm863, %v2190, %v2192
      %v2194 = vrot.slane %v1934, 2
      %v2195 = vrot.slane %v1935, 2
      %v2196 = vsel %vm863, %v2194, %v2195
      %v2197 = vrot.slane %v1936, 2
      %v2198 = vsel %vm863, %v2195, %v2197
      %v2199 = vrot.slane %v1937, 2
      %v2200 = vrot.slane %v1938, 2
      %v2201 = vsel %vm863, %v2199, %v2200
      %v2202 = vrot.slane %v1939, 2
      %v2203 = vsel %vm863, %v2200, %v2202
      %v2204 = vrot.slane %v1940, 2
      %v2205 = vrot.slane %v1941, 2
      %v2206 = vsel %vm863, %v2204, %v2205
      %v2207 = vrot.slane %v1942, 2
      %v2208 = vsel %vm863, %v2205, %v2207
      %v2209 = vrot.slane %v1943, 2
      %v2210 = vrot.slane %v1944, 2
      %v2211 = vsel %vm863, %v2209, %v2210
      %v2212 = vrot.slane %v1945, 2
      %v2213 = vsel %vm863, %v2210, %v2212
      %v2214 = vrot.slane %v1946, 2
      %v2215 = vrot.slane %v1947, 2
      %v2216 = vsel %vm863, %v2214, %v2215
      %v2217 = vrot.slane %v1948, 2
      %v2218 = vsel %vm863, %v2215, %v2217
      %v2219 = vrot.slane %v1949, 2
      %v2220 = vrot.slane %v1950, 2
      %v2221 = vsel %vm863, %v2219, %v2220
      %v2222 = vrot.slane %v1951, 2
      %v2223 = vsel %vm863, %v2220, %v2222
      %v2256 = vmax.f32 %v2112, %v2146
      %v2257 = vmax.f32 %v2113, %v2148
      %v2258 = vmax.f32 %v2114, %v2151
      %v2259 = vmax.f32 %v2115, %v2153
      %v2260 = vmax.f32 %v2116, %v2156
      %v2261 = vmax.f32 %v2117, %v2158
      %v2262 = vmax.f32 %v2118, %v2161
      %v2263 = vmax.f32 %v2119, %v2163
      %v2264 = vmax.f32 %v2120, %v2166
      %v2265 = vmax.f32 %v2121, %v2168
      %v2266 = vmax.f32 %v2122, %v2171
      %v2267 = vmax.f32 %v2123, %v2173
      %v2268 = vmax.f32 %v2124, %v2176
      %v2269 = vmax.f32 %v2125, %v2178
      %v2270 = vmax.f32 %v2126, %v2181
      %v2271 = vmax.f32 %v2127, %v2183
      %v2272 = vmax.f32 %v2128, %v2186
      %v2273 = vmax.f32 %v2129, %v2188
      %v2274 = vmax.f32 %v2130, %v2191
      %v2275 = vmax.f32 %v2131, %v2193
      %v2276 = vmax.f32 %v2132, %v2196
      %v2277 = vmax.f32 %v2133, %v2198
      %v2278 = vmax.f32 %v2134, %v2201
      %v2279 = vmax.f32 %v2135, %v2203
      %v2280 = vmax.f32 %v2136, %v2206
      %v2281 = vmax.f32 %v2137, %v2208
      %v2282 = vmax.f32 %v2138, %v2211
      %v2283 = vmax.f32 %v2139, %v2213
      %v2284 = vmax.f32 %v2140, %v2216
      %v2285 = vmax.f32 %v2141, %v2218
      %v2286 = vmax.f32 %v2142, %v2221
      %v2287 = vmax.f32 %v2143, %v2223
      %2288 = vst.msk [vmem:[%s289] sm:$0xff] %vm322, %v2256
      %2289 = vst.msk [vmem:[%s289 + $0x8] sm:$0xff] %vm322, %v2257
      %2290 = vst.msk [vmem:[%s289 + $0x10] sm:$0xff] %vm322, %v2258
      %2291 = vst.msk [vmem:[%s289 + $0x18] sm:$0xff] %vm322, %v2259
      %2292 = vst.msk [vmem:[%s289 + $0x20] sm:$0xff] %vm322, %v2260
      %2293 = vst.msk [vmem:[%s289 + $0x28] sm:$0xff] %vm322, %v2261
      %2294 = vst.msk [vmem:[%s289 + $0x30] sm:$0xff] %vm322, %v2262
      %2295 = vst.msk [vmem:[%s289 + $0x38] sm:$0xff] %vm322, %v2263
      %2296 = vst.msk [vmem:[%s289 + $0x40] sm:$0xff] %vm322, %v2264
      %2297 = vst.msk [vmem:[%s289 + $0x48] sm:$0xff] %vm322, %v2265
      %2298 = vst.msk [vmem:[%s289 + $0x50] sm:$0xff] %vm322, %v2266
      %2299 = vst.msk [vmem:[%s289 + $0x58] sm:$0xff] %vm322, %v2267
      %2300 = vst.msk [vmem:[%s289 + $0x60] sm:$0xff] %vm322, %v2268
      %2301 = vst.msk [vmem:[%s289 + $0x68] sm:$0xff] %vm322, %v2269
      %2302 = vst.msk [vmem:[%s289 + $0x70] sm:$0xff] %vm322, %v2270
      %2303 = vst.msk [vmem:[%s289 + $0x78] sm:$0xff] %vm322, %v2271
      %2304 = vst.msk [vmem:[%s289 + $0x80] sm:$0xff] %vm322, %v2272
      %2305 = vst.msk [vmem:[%s289 + $0x88] sm:$0xff] %vm322, %v2273
      %2306 = vst.msk [vmem:[%s289 + $0x90] sm:$0xff] %vm322, %v2274
      %2307 = vst.msk [vmem:[%s289 + $0x98] sm:$0xff] %vm322, %v2275
      %2308 = vst.msk [vmem:[%s289 + $0xa0] sm:$0xff] %vm322, %v2276
      %2309 = vst.msk [vmem:[%s289 + $0xa8] sm:$0xff] %vm322, %v2277
      %2310 = vst.msk [vmem:[%s289 + $0xb0] sm:$0xff] %vm322, %v2278
      %2311 = vst.msk [vmem:[%s289 + $0xb8] sm:$0xff] %vm322, %v2279
      %2312 = vst.msk [vmem:[%s289 + $0xc0] sm:$0xff] %vm322, %v2280
      %2313 = vst.msk [vmem:[%s289 + $0xc8] sm:$0xff] %vm322, %v2281
      %2314 = vst.msk [vmem:[%s289 + $0xd0] sm:$0xff] %vm322, %v2282
      %2315 = vst.msk [vmem:[%s289 + $0xd8] sm:$0xff] %vm322, %v2283
      %2316 = vst.msk [vmem:[%s289 + $0xe0] sm:$0xff] %vm322, %v2284
      %2317 = vst.msk [vmem:[%s289 + $0xe8] sm:$0xff] %vm322, %v2285
      %2318 = vst.msk [vmem:[%s289 + $0xf0] sm:$0xff] %vm322, %v2286
      %2319 = vst.msk [vmem:[%s289 + $0xf8] sm:$0xff] %vm322, %v2287
      %p2320 = scmp.lt.s32.totalorder %s20, 1
      %s2321 = scalar_select %p2320, %s20, 1
      %p2322 = scmp.lt.s32.totalorder %s21, 0
      %s2323 = scalar_select %p2322, %s21, 0
      %s2324 = smul.addr %s2321, 32
      %s2325 = sadd.s32 %s2323, %s2324
      %s2326 = smul.addr %s2325, 8
      %s2327 = scalar_lea.vmem %s1, %s2326
      %p2328 = scmp.lt.s32.totalorder %s20, 1
      %s2329 = scalar_select %p2328, %s20, 1
      %p2330 = scmp.lt.s32.totalorder %s21, 0
      %s2331 = scalar_select %p2330, %s21, 0
      %s2332 = smul.addr %s2329, 32
      %s2333 = sadd.s32 %s2331, %s2332
      %s2334 = smul.addr %s2333, 8
      %s2335 = scalar_lea.vmem %s2, %s2334
      %p2336 = scmp.lt.s32.totalorder %s20, 1
      %s2337 = scalar_select %p2336, %s20, 1
      %p2338 = scmp.lt.s32.totalorder %s21, 0
      %s2339 = scalar_select %p2338, %s21, 0
      %s2340 = smul.addr %s2337, 32
      %s2341 = sadd.s32 %s2339, %s2340
      %s2342 = smul.addr %s2341, 8
      %s2343 = scalar_lea.vmem %s3, %s2342
      %p2344 = scmp.lt.s32.totalorder %s20, 1
      %s2345 = scalar_select %p2344, %s20, 1
      %p2346 = scmp.lt.s32.totalorder %s21, 0
      %s2347 = scalar_select %p2346, %s21, 0
      %s2348 = smul.addr %s2345, 32
      %s2349 = sadd.s32 %s2347, %s2348
      %s2350 = smul.addr %s2349, 8
      %s2351 = scalar_lea.vmem %s4, %s2350
      // Predicated region
      $region25: #{tpu_custom_call.1} parent=23 // pred_check
        %p2352 = pneg %p76
      $region26: #{tpu_custom_call.1} parent=23 // pred_check_branch
        %2354 = sbr.rel (%p2352) target = $region28
      $region27: #{tpu_custom_call.1} parent=23 // pred_region
        _
      $region28: #{tpu_custom_call.1} parent=23 // pred_fallthru
        _
      // Predicated region
      $region29: #{tpu_custom_call.1} parent=23 // pred_check
        %p2355 = pneg %p104
      $region30: #{tpu_custom_call.1} parent=23 // pred_check_branch
        %2357 = sbr.rel (%p2355) target = $region32
      $region31: #{tpu_custom_call.1} parent=23 // pred_region
        _
      $region32: #{tpu_custom_call.1} parent=23 // pred_fallthru
        _
      // Predicated region
      $region33: #{tpu_custom_call.1} parent=23 // pred_check
        %p2358 = pneg %p132
      $region34: #{tpu_custom_call.1} parent=23 // pred_check_branch
        %2360 = sbr.rel (%p2358) target = $region36
      $region35: #{tpu_custom_call.1} parent=23 // pred_region
        _
      $region36: #{tpu_custom_call.1} parent=23 // pred_fallthru
        _
      // Predicated region
      $region37: #{tpu_custom_call.1} parent=23 // pred_check
        %p2361 = pneg %p160
      $region38: #{tpu_custom_call.1} parent=23 // pred_check_branch
        %2363 = sbr.rel (%p2361) target = $region40
      $region39: #{tpu_custom_call.1} parent=23 // pred_region
        _
      $region40: #{tpu_custom_call.1} parent=23 // pred_fallthru
        _
    $region24: #{tpu_custom_call.1} parent=5 // pred_fallthru
      _
    %p2364 = scmp.le.s32.totalorder 2, %s11
    // Predicated region
    $region41: #{tpu_custom_call.1} parent=5 // pred_check
      %p2365 = pneg %p2364
    $region42: #{tpu_custom_call.1} parent=5 // pred_check_branch
      %2367 = sbr.rel (%p2365) target = $region44
    $region43: #{tpu_custom_call.1} parent=5 // pred_region
      %s2368 = ssub.s32 %s11, 2
      // Predicated region
      $region45: #{tpu_custom_call.1} parent=43 // pred_check
        %p2369 = pneg %p82
      $region46: #{tpu_custom_call.1} parent=43 // pred_check_branch
        %2371 = sbr.rel (%p2369) target = $region48
      $region47: #{tpu_custom_call.1} parent=43 // pred_region
        %p2372 = scmp.lt.s32.totalorder %s22, 1
        %s2373 = scalar_select %p2372, %s22, 1
        %p2374 = scmp.lt.s32.totalorder %s23, 0
        %s2375 = scalar_select %p2374, %s23, 0
        %s2376 = smul.addr %s2373, 32
        %s2377 = sadd.s32 %s2375, %s2376
        %s2378 = smul.addr %s2377, 8
        %s2379 = scalar_lea.vmem %s1, %s2378
      $region48: #{tpu_custom_call.1} parent=43 // pred_fallthru
        _
      // Predicated region
      $region49: #{tpu_custom_call.1} parent=43 // pred_check
        %p2380 = pneg %p110
      $region50: #{tpu_custom_call.1} parent=43 // pred_check_branch
        %2382 = sbr.rel (%p2380) target = $region52
      $region51: #{tpu_custom_call.1} parent=43 // pred_region
        %p2383 = scmp.lt.s32.totalorder %s22, 1
        %s2384 = scalar_select %p2383, %s22, 1
        %p2385 = scmp.lt.s32.totalorder %s23, 0
        %s2386 = scalar_select %p2385, %s23, 0
        %s2387 = smul.addr %s2384, 32
        %s2388 = sadd.s32 %s2386, %s2387
        %s2389 = smul.addr %s2388, 8
        %s2390 = scalar_lea.vmem %s2, %s2389
      $region52: #{tpu_custom_call.1} parent=43 // pred_fallthru
        _
      // Predicated region
      $region53: #{tpu_custom_call.1} parent=43 // pred_check
        %p2391 = pneg %p138
      $region54: #{tpu_custom_call.1} parent=43 // pred_check_branch
        %2393 = sbr.rel (%p2391) target = $region56
      $region55: #{tpu_custom_call.1} parent=43 // pred_region
        %p2394 = scmp.lt.s32.totalorder %s22, 1
        %s2395 = scalar_select %p2394, %s22, 1
        %p2396 = scmp.lt.s32.totalorder %s23, 0
        %s2397 = scalar_select %p2396, %s23, 0
        %s2398 = smul.addr %s2395, 32
        %s2399 = sadd.s32 %s2397, %s2398
        %s2400 = smul.addr %s2399, 8
        %s2401 = scalar_lea.vmem %s3, %s2400
      $region56: #{tpu_custom_call.1} parent=43 // pred_fallthru
        _
      // Predicated region
      $region57: #{tpu_custom_call.1} parent=43 // pred_check
        %p2402 = pneg %p166
      $region58: #{tpu_custom_call.1} parent=43 // pred_check_branch
        %2404 = sbr.rel (%p2402) target = $region60
      $region59: #{tpu_custom_call.1} parent=43 // pred_region
        %p2405 = scmp.lt.s32.totalorder %s22, 1
        %s2406 = scalar_select %p2405, %s22, 1
        %p2407 = scmp.lt.s32.totalorder %s23, 0
        %s2408 = scalar_select %p2407, %s23, 0
        %s2409 = smul.addr %s2406, 32
        %s2410 = sadd.s32 %s2408, %s2409
        %s2411 = smul.addr %s2410, 8
        %s2412 = scalar_lea.vmem %s4, %s2411
      $region60: #{tpu_custom_call.1} parent=43 // pred_fallthru
        _
    $region44: #{tpu_custom_call.1} parent=5 // pred_fallthru
      _
  $region6: #{tpu_custom_call.1} parent=0 // loop_footer
    %s15 = sadd.s32 1, %s11
  $region7: #{tpu_custom_call.1} parent=0 // loop_footer_branch
    %10 = sbr.rel target = $region3
  $region8: #{tpu_custom_call.1} parent=0 // loop_exit
    _

</llo_original>
